<compile_context>
chip_gen: v7x
topology: tpu7x:2x2x1
jax: 0.10.0
libtpu: 0.0.40
codegen_flags: <defaults>
</compile_context>

<pallas_src>
import functools

import jax
import jax.numpy as jnp
from jax.experimental import pallas as pl
from jax.experimental.pallas import tpu as pltpu


def _realnvp_kernel(z1_ref, z2_ref,
                    w1_ref, b1_ref, w2_ref, b2_ref,
                    ws_ref, bs_ref, wt_ref, bt_ref,
                    z1_out_ref, z2_out_ref, ld_ref,
                    *, num_layers):
    """One (feature, batch-tile) slab of the full RealNVP forward.

    All tensors are in transposed layout: features on sublanes, batch on lanes.
      z1, z2           : (half, tb)
      w1[i]            : (hidden, half)   -- PyTorch (out, in) orientation
      w2[i]            : (hidden, hidden)
      ws[i], wt[i]     : (half, hidden)   -- shift / scale halves of Linear #3
      biases           : (out, 1)         -- broadcast along lanes
    """
    z1 = z1_ref[...]                      # (half, tb) f32, invariant across layers
    z2 = z2_ref[...]                      # (half, tb) f32
    tb = z1.shape[1]
    log_det = jnp.zeros((1, tb), jnp.float32)

    # num_layers is small and static -> unrolled Python loop over stacked weights.
    for i in range(num_layers):
        # MLP: Linear -> ReLU -> Linear -> ReLU -> Linear (computed as W @ Z).
        h = jnp.dot(w1_ref[i], z1, preferred_element_type=jnp.float32) + b1_ref[i]
        h = jnp.maximum(h, 0.0)
        h = jnp.dot(w2_ref[i], h, preferred_element_type=jnp.float32) + b2_ref[i]
        h = jnp.maximum(h, 0.0)

        shift = jnp.dot(ws_ref[i], h, preferred_element_type=jnp.float32) + bs_ref[i]
        x = jnp.dot(wt_ref[i], h, preferred_element_type=jnp.float32) + bt_ref[i] + 2.0

        # log(sigmoid(x)) computed stably; scale = exp(log_scale) == sigmoid(x).
        log_scale = jnp.minimum(x, 0.0) - jnp.log1p(jnp.exp(-jnp.abs(x)))
        scale = jnp.exp(log_scale)

        z2 = z2 * scale + shift
        log_det = log_det + jnp.sum(log_scale, axis=0, keepdims=True)   # (1, tb)

    z1_out_ref[...] = z1
    z2_out_ref[...] = z2
    ld_ref[...] = log_det


def realnvp_forward(z, params, *, tb=256):
    """z: (B, dim) float32.  params: dict of stacked per-layer weights in
    PyTorch (out, in) orientation.  Returns (z_out (B, dim), log_det (B,))."""
    B, dim = z.shape
    half = dim // 2
    assert tb % 128 == 0, "batch tile must be a multiple of 128 (lane width)"

    w1, b1, w2, b2 = (params[k] for k in ("w1", "b1", "w2", "b2"))
    ws, bs, wt, bt = (params[k] for k in ("w_shift", "b_shift", "w_scale", "b_scale"))
    num_layers = w1.shape[0]

    # Transpose to (feature, batch) so batch is the lane (last) axis, and pad
    # the batch up to a multiple of the tile size.
    Bp = pl.cdiv(B, tb) * tb
    z1t = z[:, :half].T
    z2t = z[:, half:].T
    if Bp != B:
        pad = ((0, 0), (0, Bp - B))
        z1t = jnp.pad(z1t, pad)
        z2t = jnp.pad(z2t, pad)

    kernel = functools.partial(_realnvp_kernel, num_layers=num_layers)

    tile_spec = pl.BlockSpec((half, tb), lambda b: (0, b))
    ld_spec = pl.BlockSpec((1, tb), lambda b: (0, b))
    vmem_full = pl.BlockSpec(memory_space=pltpu.MemorySpace.VMEM)  # grid-invariant weights

    z1_out, z2_out, log_det = pl.pallas_call(
        kernel,
        out_shape=[
            jax.ShapeDtypeStruct((half, Bp), jnp.float32),
            jax.ShapeDtypeStruct((half, Bp), jnp.float32),
            jax.ShapeDtypeStruct((1, Bp), jnp.float32),
        ],
        grid=(Bp // tb,),
        in_specs=[tile_spec, tile_spec,
                  vmem_full, vmem_full,   # w1, b1
                  vmem_full, vmem_full,   # w2, b2
                  vmem_full, vmem_full,   # w_shift, b_shift
                  vmem_full, vmem_full],  # w_scale, b_scale
        out_specs=[tile_spec, tile_spec, ld_spec],
        compiler_params=pltpu.CompilerParams(
            dimension_semantics=("parallel",)),
    )(z1t, z2t, w1, b1, w2, b2, ws, bs, wt, bt)

    z_out = jnp.concatenate([z1_out[:, :B].T, z2_out[:, :B].T], axis=1)
    return z_out, log_det[0, :B]


def init_realnvp_params(key, dim, hidden_dim, num_layers):
    """Xavier-normal weights (as in the module's init_weights), zero biases.
    Weights are stored stacked in PyTorch (out, in) orientation; the final
    Linear (hidden -> dim) is pre-split into its shift / scale row-halves."""
    half = dim // 2

    def xavier(key, fan_in, fan_out, shape):
        std = (2.0 / (fan_in + fan_out)) ** 0.5
        return std * jax.random.normal(key, shape, dtype=jnp.float32)

    k1, k2, k3 = jax.random.split(key, 3)
    # Full third-layer weight is (dim, hidden); its xavier std uses (hidden, dim).
    w3_full = xavier(k3, hidden_dim, dim, (num_layers, dim, hidden_dim))
    params = {
        "w1": xavier(k1, half, hidden_dim, (num_layers, hidden_dim, half)),
        "b1": jnp.zeros((num_layers, hidden_dim, 1), jnp.float32),
        "w2": xavier(k2, hidden_dim, hidden_dim, (num_layers, hidden_dim, hidden_dim)),
        "b2": jnp.zeros((num_layers, hidden_dim, 1), jnp.float32),
        "w_shift": w3_full[:, :half, :],
        "b_shift": jnp.zeros((num_layers, half, 1), jnp.float32),
        "w_scale": w3_full[:, half:, :],
        "b_scale": jnp.zeros((num_layers, half, 1), jnp.float32),
    }
    return params


def realnvp_forward_ref(z, params):
    """Pure-JAX reference mirroring the PyTorch forward exactly (batch-major)."""
    B, dim = z.shape
    half = dim // 2
    num_layers = params["w1"].shape[0]
    log_det = jnp.zeros((B,), jnp.float32)
    for i in range(num_layers):
        z1, z2 = z[:, :half], z[:, half:]
        h = jnp.maximum(z1 @ params["w1"][i].T + params["b1"][i][:, 0], 0.0)
        h = jnp.maximum(h @ params["w2"][i].T + params["b2"][i][:, 0], 0.0)
        shift = h @ params["w_shift"][i].T + params["b_shift"][i][:, 0]
        scale = jax.nn.sigmoid(h @ params["w_scale"][i].T + params["b_scale"][i][:, 0] + 2.0)
        z2 = z2 * scale + shift
        z = jnp.concatenate([z1, z2], axis=1)
        log_det = log_det + jnp.sum(jnp.log(scale), axis=1)
    return z, log_det


if __name__ == "__main__":
    # Shapes consistent with the module: dim=16, hidden_dim=32, num_layers=3.
    # B=512 with tb=256 -> 2 "parallel" grid steps (feeds both v7x TensorCores).
    B, DIM, HIDDEN, LAYERS = 512, 16, 32, 3

    key = jax.random.PRNGKey(0)
    kz, kp = jax.random.split(key)
    z = jax.random.normal(kz, (B, DIM), dtype=jnp.float32)
    params = init_realnvp_params(kp, DIM, HIDDEN, LAYERS)

    z_out, log_det = realnvp_forward(z, params, tb=256)
    jax.block_until_ready((z_out, log_det))

    z_ref, ld_ref = realnvp_forward_ref(z, params)
    assert jnp.allclose(z_out, z_ref, atol=1e-4, rtol=1e-5), "z mismatch"
    assert jnp.allclose(log_det, ld_ref, atol=1e-4, rtol=1e-5), "log_det mismatch"

    print("KERNEL_OK")
</pallas_src>

<mosaic_0001>
module attributes {stable_mosaic.version = 11 : i64} {
  func.func @_realnvp_kernel(%arg0: i32, %arg1: memref<8x256xf32, #tpu.memory_space<vmem>>, %arg2: memref<8x256xf32, #tpu.memory_space<vmem>>, %arg3: memref<3x32x8xf32, #tpu.memory_space<vmem>>, %arg4: memref<3x32x1xf32, #tpu.memory_space<vmem>>, %arg5: memref<3x32x32xf32, #tpu.memory_space<vmem>>, %arg6: memref<3x32x1xf32, #tpu.memory_space<vmem>>, %arg7: memref<3x8x32xf32, #tpu.memory_space<vmem>>, %arg8: memref<3x8x1xf32, #tpu.memory_space<vmem>>, %arg9: memref<3x8x32xf32, #tpu.memory_space<vmem>>, %arg10: memref<3x8x1xf32, #tpu.memory_space<vmem>>, %arg11: memref<8x256xf32, #tpu.memory_space<vmem>>, %arg12: memref<8x256xf32, #tpu.memory_space<vmem>>, %arg13: memref<1x256xf32, #tpu.memory_space<vmem>>) attributes {dimension_semantics = [#tpu.dimension_semantics<parallel>], iteration_bounds = array<i64: 2>, scalar_prefetch = 0 : i64, scratch_operands = 0 : i64, tpu.core_type = #tpu.core_type<tc>, window_params = [{transform_indices = @transform_0, window_bounds = array<i64: 8, 256>}, {transform_indices = @transform_1, window_bounds = array<i64: 8, 256>}, {pipeline_mode = #tpu.pipeline_mode<synchronous>, transform_indices = @transform_2, window_bounds = array<i64: 3, 32, 8>}, {pipeline_mode = #tpu.pipeline_mode<synchronous>, transform_indices = @transform_3, window_bounds = array<i64: 3, 32, 1>}, {pipeline_mode = #tpu.pipeline_mode<synchronous>, transform_indices = @transform_4, window_bounds = array<i64: 3, 32, 32>}, {pipeline_mode = #tpu.pipeline_mode<synchronous>, transform_indices = @transform_5, window_bounds = array<i64: 3, 32, 1>}, {pipeline_mode = #tpu.pipeline_mode<synchronous>, transform_indices = @transform_6, window_bounds = array<i64: 3, 8, 32>}, {pipeline_mode = #tpu.pipeline_mode<synchronous>, transform_indices = @transform_7, window_bounds = array<i64: 3, 8, 1>}, {pipeline_mode = #tpu.pipeline_mode<synchronous>, transform_indices = @transform_8, window_bounds = array<i64: 3, 8, 32>}, {pipeline_mode = #tpu.pipeline_mode<synchronous>, transform_indices = @transform_9, window_bounds = array<i64: 3, 8, 1>}, {transform_indices = @transform_10, window_bounds = array<i64: 8, 256>}, {transform_indices = @transform_11, window_bounds = array<i64: 8, 256>}, {transform_indices = @transform_12, window_bounds = array<i64: 1, 256>}]} {
    %c0 = arith.constant 0 : index
    %c0_0 = arith.constant 0 : index
    %0 = vector.load %arg1[%c0, %c0_0] : memref<8x256xf32, #tpu.memory_space<vmem>>, vector<8x256xf32>
    %c0_1 = arith.constant 0 : index
    %c0_2 = arith.constant 0 : index
    %1 = vector.load %arg2[%c0_1, %c0_2] : memref<8x256xf32, #tpu.memory_space<vmem>>, vector<8x256xf32>
    %cst = arith.constant 0.000000e+00 : f32
    %2 = vector.broadcast %cst : f32 to vector<1x256xf32>
    %c0_3 = arith.constant 0 : index
    %c0_4 = arith.constant 0 : index
    %c0_5 = arith.constant 0 : index
    %3 = vector.load %arg3[%c0_3, %c0_4, %c0_5] : memref<3x32x8xf32, #tpu.memory_space<vmem>>, vector<1x32x8xf32>
    %4 = vector.shape_cast %3 : vector<1x32x8xf32> to vector<32x8xf32>
    %cst_6 = arith.constant dense<0.000000e+00> : vector<32x256xf32>
    %5 = tpu.matmul %4, %0, %cst_6 {dimension_numbers = #tpu.dot_dimension_numbers<[1], [0], [0], [1], [0, 0, 1, 1], [], []>} : vector<32x8xf32>, vector<8x256xf32>, vector<32x256xf32> -> vector<32x256xf32>
    %c0_7 = arith.constant 0 : index
    %c0_8 = arith.constant 0 : index
    %c0_9 = arith.constant 0 : index
    %6 = vector.load %arg4[%c0_7, %c0_8, %c0_9] : memref<3x32x1xf32, #tpu.memory_space<vmem>>, vector<1x32x1xf32>
    %7 = vector.shape_cast %6 : vector<1x32x1xf32> to vector<32x1xf32>
    %8 = vector.broadcast %7 : vector<32x1xf32> to vector<32x256xf32>
    %9 = arith.addf %5, %8 : vector<32x256xf32>
    %cst_10 = arith.constant 0.000000e+00 : f32
    %10 = vector.broadcast %cst_10 : f32 to vector<32x256xf32>
    %11 = arith.maximumf %9, %10 : vector<32x256xf32>
    %c0_11 = arith.constant 0 : index
    %c0_12 = arith.constant 0 : index
    %c0_13 = arith.constant 0 : index
    %12 = vector.load %arg5[%c0_11, %c0_12, %c0_13] : memref<3x32x32xf32, #tpu.memory_space<vmem>>, vector<1x32x32xf32>
    %13 = vector.shape_cast %12 : vector<1x32x32xf32> to vector<32x32xf32>
    %cst_14 = arith.constant dense<0.000000e+00> : vector<32x256xf32>
    %14 = tpu.matmul %13, %11, %cst_14 {dimension_numbers = #tpu.dot_dimension_numbers<[1], [0], [0], [1], [0, 0, 1, 1], [], []>} : vector<32x32xf32>, vector<32x256xf32>, vector<32x256xf32> -> vector<32x256xf32>
    %c0_15 = arith.constant 0 : index
    %c0_16 = arith.constant 0 : index
    %c0_17 = arith.constant 0 : index
    %15 = vector.load %arg6[%c0_15, %c0_16, %c0_17] : memref<3x32x1xf32, #tpu.memory_space<vmem>>, vector<1x32x1xf32>
    %16 = vector.shape_cast %15 : vector<1x32x1xf32> to vector<32x1xf32>
    %17 = vector.broadcast %16 : vector<32x1xf32> to vector<32x256xf32>
    %18 = arith.addf %14, %17 : vector<32x256xf32>
    %cst_18 = arith.constant 0.000000e+00 : f32
    %19 = vector.broadcast %cst_18 : f32 to vector<32x256xf32>
    %20 = arith.maximumf %18, %19 : vector<32x256xf32>
    %c0_19 = arith.constant 0 : index
    %c0_20 = arith.constant 0 : index
    %c0_21 = arith.constant 0 : index
    %21 = vector.load %arg7[%c0_19, %c0_20, %c0_21] : memref<3x8x32xf32, #tpu.memory_space<vmem>>, vector<1x8x32xf32>
    %22 = vector.shape_cast %21 : vector<1x8x32xf32> to vector<8x32xf32>
    %cst_22 = arith.constant dense<0.000000e+00> : vector<8x256xf32>
    %23 = tpu.matmul %22, %20, %cst_22 {dimension_numbers = #tpu.dot_dimension_numbers<[1], [0], [0], [1], [0, 0, 1, 1], [], []>} : vector<8x32xf32>, vector<32x256xf32>, vector<8x256xf32> -> vector<8x256xf32>
    %c0_23 = arith.constant 0 : index
    %c0_24 = arith.constant 0 : index
    %c0_25 = arith.constant 0 : index
    %24 = vector.load %arg8[%c0_23, %c0_24, %c0_25] : memref<3x8x1xf32, #tpu.memory_space<vmem>>, vector<1x8x1xf32>
    %25 = vector.shape_cast %24 : vector<1x8x1xf32> to vector<8x1xf32>
    %26 = vector.broadcast %25 : vector<8x1xf32> to vector<8x256xf32>
    %27 = arith.addf %23, %26 : vector<8x256xf32>
    %c0_26 = arith.constant 0 : index
    %c0_27 = arith.constant 0 : index
    %c0_28 = arith.constant 0 : index
    %28 = vector.load %arg9[%c0_26, %c0_27, %c0_28] : memref<3x8x32xf32, #tpu.memory_space<vmem>>, vector<1x8x32xf32>
    %29 = vector.shape_cast %28 : vector<1x8x32xf32> to vector<8x32xf32>
    %cst_29 = arith.constant dense<0.000000e+00> : vector<8x256xf32>
    %30 = tpu.matmul %29, %20, %cst_29 {dimension_numbers = #tpu.dot_dimension_numbers<[1], [0], [0], [1], [0, 0, 1, 1], [], []>} : vector<8x32xf32>, vector<32x256xf32>, vector<8x256xf32> -> vector<8x256xf32>
    %c0_30 = arith.constant 0 : index
    %c0_31 = arith.constant 0 : index
    %c0_32 = arith.constant 0 : index
    %31 = vector.load %arg10[%c0_30, %c0_31, %c0_32] : memref<3x8x1xf32, #tpu.memory_space<vmem>>, vector<1x8x1xf32>
    %32 = vector.shape_cast %31 : vector<1x8x1xf32> to vector<8x1xf32>
    %33 = vector.broadcast %32 : vector<8x1xf32> to vector<8x256xf32>
    %34 = arith.addf %30, %33 : vector<8x256xf32>
    %cst_33 = arith.constant 2.000000e+00 : f32
    %35 = vector.broadcast %cst_33 : f32 to vector<8x256xf32>
    %36 = arith.addf %34, %35 : vector<8x256xf32>
    %cst_34 = arith.constant 0.000000e+00 : f32
    %37 = vector.broadcast %cst_34 : f32 to vector<8x256xf32>
    %38 = arith.minimumf %36, %37 : vector<8x256xf32>
    %39 = math.absf %36 : vector<8x256xf32>
    %cst_35 = arith.constant 0.000000e+00 : f32
    %40 = vector.broadcast %cst_35 : f32 to vector<8x256xf32>
    %41 = arith.subf %40, %39 : vector<8x256xf32>
    %42 = math.exp %41 : vector<8x256xf32>
    %43 = math.log1p %42 : vector<8x256xf32>
    %44 = arith.subf %38, %43 : vector<8x256xf32>
    %45 = math.exp %44 : vector<8x256xf32>
    %46 = arith.mulf %1, %45 : vector<8x256xf32>
    %47 = arith.addf %46, %27 : vector<8x256xf32>
    %cst_36 = arith.constant dense<0.000000e+00> : vector<256xf32>
    %48 = vector.multi_reduction <add>, %44, %cst_36 [0] : vector<8x256xf32> to vector<256xf32>
    %49 = vector.shape_cast %48 : vector<256xf32> to vector<1x256xf32>
    %50 = arith.addf %2, %49 : vector<1x256xf32>
    %c1 = arith.constant 1 : index
    %c0_37 = arith.constant 0 : index
    %c0_38 = arith.constant 0 : index
    %51 = vector.load %arg3[%c1, %c0_37, %c0_38] : memref<3x32x8xf32, #tpu.memory_space<vmem>>, vector<1x32x8xf32>
    %52 = vector.shape_cast %51 : vector<1x32x8xf32> to vector<32x8xf32>
    %cst_39 = arith.constant dense<0.000000e+00> : vector<32x256xf32>
    %53 = tpu.matmul %52, %0, %cst_39 {dimension_numbers = #tpu.dot_dimension_numbers<[1], [0], [0], [1], [0, 0, 1, 1], [], []>} : vector<32x8xf32>, vector<8x256xf32>, vector<32x256xf32> -> vector<32x256xf32>
    %c1_40 = arith.constant 1 : index
    %c0_41 = arith.constant 0 : index
    %c0_42 = arith.constant 0 : index
    %54 = vector.load %arg4[%c1_40, %c0_41, %c0_42] : memref<3x32x1xf32, #tpu.memory_space<vmem>>, vector<1x32x1xf32>
    %55 = vector.shape_cast %54 : vector<1x32x1xf32> to vector<32x1xf32>
    %56 = vector.broadcast %55 : vector<32x1xf32> to vector<32x256xf32>
    %57 = arith.addf %53, %56 : vector<32x256xf32>
    %cst_43 = arith.constant 0.000000e+00 : f32
    %58 = vector.broadcast %cst_43 : f32 to vector<32x256xf32>
    %59 = arith.maximumf %57, %58 : vector<32x256xf32>
    %c1_44 = arith.constant 1 : index
    %c0_45 = arith.constant 0 : index
    %c0_46 = arith.constant 0 : index
    %60 = vector.load %arg5[%c1_44, %c0_45, %c0_46] : memref<3x32x32xf32, #tpu.memory_space<vmem>>, vector<1x32x32xf32>
    %61 = vector.shape_cast %60 : vector<1x32x32xf32> to vector<32x32xf32>
    %cst_47 = arith.constant dense<0.000000e+00> : vector<32x256xf32>
    %62 = tpu.matmul %61, %59, %cst_47 {dimension_numbers = #tpu.dot_dimension_numbers<[1], [0], [0], [1], [0, 0, 1, 1], [], []>} : vector<32x32xf32>, vector<32x256xf32>, vector<32x256xf32> -> vector<32x256xf32>
    %c1_48 = arith.constant 1 : index
    %c0_49 = arith.constant 0 : index
    %c0_50 = arith.constant 0 : index
    %63 = vector.load %arg6[%c1_48, %c0_49, %c0_50] : memref<3x32x1xf32, #tpu.memory_space<vmem>>, vector<1x32x1xf32>
    %64 = vector.shape_cast %63 : vector<1x32x1xf32> to vector<32x1xf32>
    %65 = vector.broadcast %64 : vector<32x1xf32> to vector<32x256xf32>
    %66 = arith.addf %62, %65 : vector<32x256xf32>
    %cst_51 = arith.constant 0.000000e+00 : f32
    %67 = vector.broadcast %cst_51 : f32 to vector<32x256xf32>
    %68 = arith.maximumf %66, %67 : vector<32x256xf32>
    %c1_52 = arith.constant 1 : index
    %c0_53 = arith.constant 0 : index
    %c0_54 = arith.constant 0 : index
    %69 = vector.load %arg7[%c1_52, %c0_53, %c0_54] : memref<3x8x32xf32, #tpu.memory_space<vmem>>, vector<1x8x32xf32>
    %70 = vector.shape_cast %69 : vector<1x8x32xf32> to vector<8x32xf32>
    %cst_55 = arith.constant dense<0.000000e+00> : vector<8x256xf32>
    %71 = tpu.matmul %70, %68, %cst_55 {dimension_numbers = #tpu.dot_dimension_numbers<[1], [0], [0], [1], [0, 0, 1, 1], [], []>} : vector<8x32xf32>, vector<32x256xf32>, vector<8x256xf32> -> vector<8x256xf32>
    %c1_56 = arith.constant 1 : index
    %c0_57 = arith.constant 0 : index
    %c0_58 = arith.constant 0 : index
    %72 = vector.load %arg8[%c1_56, %c0_57, %c0_58] : memref<3x8x1xf32, #tpu.memory_space<vmem>>, vector<1x8x1xf32>
    %73 = vector.shape_cast %72 : vector<1x8x1xf32> to vector<8x1xf32>
    %74 = vector.broadcast %73 : vector<8x1xf32> to vector<8x256xf32>
    %75 = arith.addf %71, %74 : vector<8x256xf32>
    %c1_59 = arith.constant 1 : index
    %c0_60 = arith.constant 0 : index
    %c0_61 = arith.constant 0 : index
    %76 = vector.load %arg9[%c1_59, %c0_60, %c0_61] : memref<3x8x32xf32, #tpu.memory_space<vmem>>, vector<1x8x32xf32>
    %77 = vector.shape_cast %76 : vector<1x8x32xf32> to vector<8x32xf32>
    %cst_62 = arith.constant dense<0.000000e+00> : vector<8x256xf32>
    %78 = tpu.matmul %77, %68, %cst_62 {dimension_numbers = #tpu.dot_dimension_numbers<[1], [0], [0], [1], [0, 0, 1, 1], [], []>} : vector<8x32xf32>, vector<32x256xf32>, vector<8x256xf32> -> vector<8x256xf32>
    %c1_63 = arith.constant 1 : index
    %c0_64 = arith.constant 0 : index
    %c0_65 = arith.constant 0 : index
    %79 = vector.load %arg10[%c1_63, %c0_64, %c0_65] : memref<3x8x1xf32, #tpu.memory_space<vmem>>, vector<1x8x1xf32>
    %80 = vector.shape_cast %79 : vector<1x8x1xf32> to vector<8x1xf32>
    %81 = vector.broadcast %80 : vector<8x1xf32> to vector<8x256xf32>
    %82 = arith.addf %78, %81 : vector<8x256xf32>
    %cst_66 = arith.constant 2.000000e+00 : f32
    %83 = vector.broadcast %cst_66 : f32 to vector<8x256xf32>
    %84 = arith.addf %82, %83 : vector<8x256xf32>
    %cst_67 = arith.constant 0.000000e+00 : f32
    %85 = vector.broadcast %cst_67 : f32 to vector<8x256xf32>
    %86 = arith.minimumf %84, %85 : vector<8x256xf32>
    %87 = math.absf %84 : vector<8x256xf32>
    %cst_68 = arith.constant 0.000000e+00 : f32
    %88 = vector.broadcast %cst_68 : f32 to vector<8x256xf32>
    %89 = arith.subf %88, %87 : vector<8x256xf32>
    %90 = math.exp %89 : vector<8x256xf32>
    %91 = math.log1p %90 : vector<8x256xf32>
    %92 = arith.subf %86, %91 : vector<8x256xf32>
    %93 = math.exp %92 : vector<8x256xf32>
    %94 = arith.mulf %47, %93 : vector<8x256xf32>
    %95 = arith.addf %94, %75 : vector<8x256xf32>
    %cst_69 = arith.constant dense<0.000000e+00> : vector<256xf32>
    %96 = vector.multi_reduction <add>, %92, %cst_69 [0] : vector<8x256xf32> to vector<256xf32>
    %97 = vector.shape_cast %96 : vector<256xf32> to vector<1x256xf32>
    %98 = arith.addf %50, %97 : vector<1x256xf32>
    %c2 = arith.constant 2 : index
    %c0_70 = arith.constant 0 : index
    %c0_71 = arith.constant 0 : index
    %99 = vector.load %arg3[%c2, %c0_70, %c0_71] : memref<3x32x8xf32, #tpu.memory_space<vmem>>, vector<1x32x8xf32>
    %100 = vector.shape_cast %99 : vector<1x32x8xf32> to vector<32x8xf32>
    %cst_72 = arith.constant dense<0.000000e+00> : vector<32x256xf32>
    %101 = tpu.matmul %100, %0, %cst_72 {dimension_numbers = #tpu.dot_dimension_numbers<[1], [0], [0], [1], [0, 0, 1, 1], [], []>} : vector<32x8xf32>, vector<8x256xf32>, vector<32x256xf32> -> vector<32x256xf32>
    %c2_73 = arith.constant 2 : index
    %c0_74 = arith.constant 0 : index
    %c0_75 = arith.constant 0 : index
    %102 = vector.load %arg4[%c2_73, %c0_74, %c0_75] : memref<3x32x1xf32, #tpu.memory_space<vmem>>, vector<1x32x1xf32>
    %103 = vector.shape_cast %102 : vector<1x32x1xf32> to vector<32x1xf32>
    %104 = vector.broadcast %103 : vector<32x1xf32> to vector<32x256xf32>
    %105 = arith.addf %101, %104 : vector<32x256xf32>
    %cst_76 = arith.constant 0.000000e+00 : f32
    %106 = vector.broadcast %cst_76 : f32 to vector<32x256xf32>
    %107 = arith.maximumf %105, %106 : vector<32x256xf32>
    %c2_77 = arith.constant 2 : index
    %c0_78 = arith.constant 0 : index
    %c0_79 = arith.constant 0 : index
    %108 = vector.load %arg5[%c2_77, %c0_78, %c0_79] : memref<3x32x32xf32, #tpu.memory_space<vmem>>, vector<1x32x32xf32>
    %109 = vector.shape_cast %108 : vector<1x32x32xf32> to vector<32x32xf32>
    %cst_80 = arith.constant dense<0.000000e+00> : vector<32x256xf32>
    %110 = tpu.matmul %109, %107, %cst_80 {dimension_numbers = #tpu.dot_dimension_numbers<[1], [0], [0], [1], [0, 0, 1, 1], [], []>} : vector<32x32xf32>, vector<32x256xf32>, vector<32x256xf32> -> vector<32x256xf32>
    %c2_81 = arith.constant 2 : index
    %c0_82 = arith.constant 0 : index
    %c0_83 = arith.constant 0 : index
    %111 = vector.load %arg6[%c2_81, %c0_82, %c0_83] : memref<3x32x1xf32, #tpu.memory_space<vmem>>, vector<1x32x1xf32>
    %112 = vector.shape_cast %111 : vector<1x32x1xf32> to vector<32x1xf32>
    %113 = vector.broadcast %112 : vector<32x1xf32> to vector<32x256xf32>
    %114 = arith.addf %110, %113 : vector<32x256xf32>
    %cst_84 = arith.constant 0.000000e+00 : f32
    %115 = vector.broadcast %cst_84 : f32 to vector<32x256xf32>
    %116 = arith.maximumf %114, %115 : vector<32x256xf32>
    %c2_85 = arith.constant 2 : index
    %c0_86 = arith.constant 0 : index
    %c0_87 = arith.constant 0 : index
    %117 = vector.load %arg7[%c2_85, %c0_86, %c0_87] : memref<3x8x32xf32, #tpu.memory_space<vmem>>, vector<1x8x32xf32>
    %118 = vector.shape_cast %117 : vector<1x8x32xf32> to vector<8x32xf32>
    %cst_88 = arith.constant dense<0.000000e+00> : vector<8x256xf32>
    %119 = tpu.matmul %118, %116, %cst_88 {dimension_numbers = #tpu.dot_dimension_numbers<[1], [0], [0], [1], [0, 0, 1, 1], [], []>} : vector<8x32xf32>, vector<32x256xf32>, vector<8x256xf32> -> vector<8x256xf32>
    %c2_89 = arith.constant 2 : index
    %c0_90 = arith.constant 0 : index
    %c0_91 = arith.constant 0 : index
    %120 = vector.load %arg8[%c2_89, %c0_90, %c0_91] : memref<3x8x1xf32, #tpu.memory_space<vmem>>, vector<1x8x1xf32>
    %121 = vector.shape_cast %120 : vector<1x8x1xf32> to vector<8x1xf32>
    %122 = vector.broadcast %121 : vector<8x1xf32> to vector<8x256xf32>
    %123 = arith.addf %119, %122 : vector<8x256xf32>
    %c2_92 = arith.constant 2 : index
    %c0_93 = arith.constant 0 : index
    %c0_94 = arith.constant 0 : index
    %124 = vector.load %arg9[%c2_92, %c0_93, %c0_94] : memref<3x8x32xf32, #tpu.memory_space<vmem>>, vector<1x8x32xf32>
    %125 = vector.shape_cast %124 : vector<1x8x32xf32> to vector<8x32xf32>
    %cst_95 = arith.constant dense<0.000000e+00> : vector<8x256xf32>
    %126 = tpu.matmul %125, %116, %cst_95 {dimension_numbers = #tpu.dot_dimension_numbers<[1], [0], [0], [1], [0, 0, 1, 1], [], []>} : vector<8x32xf32>, vector<32x256xf32>, vector<8x256xf32> -> vector<8x256xf32>
    %c2_96 = arith.constant 2 : index
    %c0_97 = arith.constant 0 : index
    %c0_98 = arith.constant 0 : index
    %127 = vector.load %arg10[%c2_96, %c0_97, %c0_98] : memref<3x8x1xf32, #tpu.memory_space<vmem>>, vector<1x8x1xf32>
    %128 = vector.shape_cast %127 : vector<1x8x1xf32> to vector<8x1xf32>
    %129 = vector.broadcast %128 : vector<8x1xf32> to vector<8x256xf32>
    %130 = arith.addf %126, %129 : vector<8x256xf32>
    %cst_99 = arith.constant 2.000000e+00 : f32
    %131 = vector.broadcast %cst_99 : f32 to vector<8x256xf32>
    %132 = arith.addf %130, %131 : vector<8x256xf32>
    %cst_100 = arith.constant 0.000000e+00 : f32
    %133 = vector.broadcast %cst_100 : f32 to vector<8x256xf32>
    %134 = arith.minimumf %132, %133 : vector<8x256xf32>
    %135 = math.absf %132 : vector<8x256xf32>
    %cst_101 = arith.constant 0.000000e+00 : f32
    %136 = vector.broadcast %cst_101 : f32 to vector<8x256xf32>
    %137 = arith.subf %136, %135 : vector<8x256xf32>
    %138 = math.exp %137 : vector<8x256xf32>
    %139 = math.log1p %138 : vector<8x256xf32>
    %140 = arith.subf %134, %139 : vector<8x256xf32>
    %141 = math.exp %140 : vector<8x256xf32>
    %142 = arith.mulf %95, %141 : vector<8x256xf32>
    %143 = arith.addf %142, %123 : vector<8x256xf32>
    %cst_102 = arith.constant dense<0.000000e+00> : vector<256xf32>
    %144 = vector.multi_reduction <add>, %140, %cst_102 [0] : vector<8x256xf32> to vector<256xf32>
    %145 = vector.shape_cast %144 : vector<256xf32> to vector<1x256xf32>
    %146 = arith.addf %98, %145 : vector<1x256xf32>
    %c0_103 = arith.constant 0 : index
    %c0_104 = arith.constant 0 : index
    %147 = vector.load %arg11[%c0_103, %c0_104] : memref<8x256xf32, #tpu.memory_space<vmem>>, vector<8x256xf32>
    tpu.vector_store %arg11[%c0_103, %c0_104], %0 {strides = array<i32>} : memref<8x256xf32, #tpu.memory_space<vmem>>, vector<8x256xf32>,
    %c0_105 = arith.constant 0 : index
    %c0_106 = arith.constant 0 : index
    %148 = vector.load %arg12[%c0_105, %c0_106] : memref<8x256xf32, #tpu.memory_space<vmem>>, vector<8x256xf32>
    tpu.vector_store %arg12[%c0_105, %c0_106], %143 {strides = array<i32>} : memref<8x256xf32, #tpu.memory_space<vmem>>, vector<8x256xf32>,
    %c0_107 = arith.constant 0 : index
    %c0_108 = arith.constant 0 : index
    %149 = vector.load %arg13[%c0_107, %c0_108] : memref<1x256xf32, #tpu.memory_space<vmem>>, vector<1x256xf32>
    tpu.vector_store %arg13[%c0_107, %c0_108], %146 {strides = array<i32>} : memref<1x256xf32, #tpu.memory_space<vmem>>, vector<1x256xf32>,
    return
  }
  func.func @transform_0(%arg0: i32) -> (i32, i32) {
    %c0_i32 = arith.constant 0 : i32
    %c0_i32_0 = arith.constant 0 : i32
    return %c0_i32, %arg0 : i32, i32
  }
  func.func @transform_1(%arg0: i32) -> (i32, i32) {
    %c0_i32 = arith.constant 0 : i32
    %c0_i32_0 = arith.constant 0 : i32
    return %c0_i32, %arg0 : i32, i32
  }
  func.func @transform_2(%arg0: i32) -> (i32, i32, i32) {
    %c0_i32 = arith.constant 0 : i32
    %c0_i32_0 = arith.constant 0 : i32
    %c0_i32_1 = arith.constant 0 : i32
    %c0_i32_2 = arith.constant 0 : i32
    return %c0_i32, %c0_i32_0, %c0_i32_1 : i32, i32, i32
  }
  func.func @transform_3(%arg0: i32) -> (i32, i32, i32) {
    %c0_i32 = arith.constant 0 : i32
    %c0_i32_0 = arith.constant 0 : i32
    %c0_i32_1 = arith.constant 0 : i32
    %c0_i32_2 = arith.constant 0 : i32
    return %c0_i32, %c0_i32_0, %c0_i32_1 : i32, i32, i32
  }
  func.func @transform_4(%arg0: i32) -> (i32, i32, i32) {
    %c0_i32 = arith.constant 0 : i32
    %c0_i32_0 = arith.constant 0 : i32
    %c0_i32_1 = arith.constant 0 : i32
    %c0_i32_2 = arith.constant 0 : i32
    return %c0_i32, %c0_i32_0, %c0_i32_1 : i32, i32, i32
  }
  func.func @transform_5(%arg0: i32) -> (i32, i32, i32) {
    %c0_i32 = arith.constant 0 : i32
    %c0_i32_0 = arith.constant 0 : i32
    %c0_i32_1 = arith.constant 0 : i32
    %c0_i32_2 = arith.constant 0 : i32
    return %c0_i32, %c0_i32_0, %c0_i32_1 : i32, i32, i32
  }
  func.func @transform_6(%arg0: i32) -> (i32, i32, i32) {
    %c0_i32 = arith.constant 0 : i32
    %c0_i32_0 = arith.constant 0 : i32
    %c0_i32_1 = arith.constant 0 : i32
    %c0_i32_2 = arith.constant 0 : i32
    return %c0_i32, %c0_i32_0, %c0_i32_1 : i32, i32, i32
  }
  func.func @transform_7(%arg0: i32) -> (i32, i32, i32) {
    %c0_i32 = arith.constant 0 : i32
    %c0_i32_0 = arith.constant 0 : i32
    %c0_i32_1 = arith.constant 0 : i32
    %c0_i32_2 = arith.constant 0 : i32
    return %c0_i32, %c0_i32_0, %c0_i32_1 : i32, i32, i32
  }
  func.func @transform_8(%arg0: i32) -> (i32, i32, i32) {
    %c0_i32 = arith.constant 0 : i32
    %c0_i32_0 = arith.constant 0 : i32
    %c0_i32_1 = arith.constant 0 : i32
    %c0_i32_2 = arith.constant 0 : i32
    return %c0_i32, %c0_i32_0, %c0_i32_1 : i32, i32, i32
  }
  func.func @transform_9(%arg0: i32) -> (i32, i32, i32) {
    %c0_i32 = arith.constant 0 : i32
    %c0_i32_0 = arith.constant 0 : i32
    %c0_i32_1 = arith.constant 0 : i32
    %c0_i32_2 = arith.constant 0 : i32
    return %c0_i32, %c0_i32_0, %c0_i32_1 : i32, i32, i32
  }
  func.func @transform_10(%arg0: i32) -> (i32, i32) {
    %c0_i32 = arith.constant 0 : i32
    %c0_i32_0 = arith.constant 0 : i32
    return %c0_i32, %arg0 : i32, i32
  }
  func.func @transform_11(%arg0: i32) -> (i32, i32) {
    %c0_i32 = arith.constant 0 : i32
    %c0_i32_0 = arith.constant 0 : i32
    return %c0_i32, %arg0 : i32, i32
  }
  func.func @transform_12(%arg0: i32) -> (i32, i32) {
    %c0_i32 = arith.constant 0 : i32
    %c0_i32_0 = arith.constant 0 : i32
    return %c0_i32, %arg0 : i32, i32
  }
}

</mosaic_0001>

<llo_original>
// kernel: tpu_custom_call.1
$region0: #{tpu_custom_call.1}
  #allocation0 [shape = 'u32[]', space=smem, size = 0x4, offset = 0x4, fixed_abs, tag = 'smem constant byte address 0x4 - core index']
  #allocation1 [shape = 'u32[144,128]{1,0:T(1,128)}', space=vmem, size = 0x12000, scoped, tag = 'internal scratch']
  %s0 = inlined_call_operand.vmem [shape: f32[8,512], index: 0, kind: input, shape index: {}]
  %s1 = inlined_call_operand.vmem [shape: f32[8,512], index: 1, kind: input, shape index: {}]
  %s2 = inlined_call_operand.vmem [shape: f32[3,32,8], index: 2, kind: input, shape index: {}]
  %s3 = inlined_call_operand.vmem [shape: f32[3,32,1], index: 3, kind: input, shape index: {}]
  %s4 = inlined_call_operand.vmem [shape: f32[3,32,32], index: 4, kind: input, shape index: {}]
  %s5 = inlined_call_operand.vmem [shape: f32[3,32,1], index: 5, kind: input, shape index: {}]
  %s6 = inlined_call_operand.vmem [shape: f32[3,8,32], index: 6, kind: input, shape index: {}]
  %s7 = inlined_call_operand.vmem [shape: f32[3,8,1], index: 7, kind: input, shape index: {}]
  %s8 = inlined_call_operand.vmem [shape: f32[3,8,32], index: 8, kind: input, shape index: {}]
  %s9 = inlined_call_operand.vmem [shape: f32[3,8,1], index: 9, kind: input, shape index: {}]
  %s10 = inlined_call_operand.hbm [shape: f32[8,512], index: 10, kind: output, shape index: {0}]
  %s11 = inlined_call_operand.hbm [shape: f32[8,512], index: 11, kind: output, shape index: {1}]
  %s12 = inlined_call_operand.hbm [shape: f32[1,512], index: 12, kind: output, shape index: {2}]
  %13 = xla_tuple %s10, %s11, %s12
  %s14 = sld [smem:[#allocation0]]
  $region89: #{tpu_custom_call.1} parent=0
    _
  %s16 = ssub.s32 1, %s14
  %s17 = scalar_select 0, %s16, %s14
  $region1: #{tpu_custom_call.1} parent=0
    #allocation2 [shape = 'u8[16384]{0}', space=vmem, size = 0x4000, scoped, tag = 'output window, operand 0']
    #allocation3 [shape = 's32[2]{0}', space=sflag, size = 0x8, scoped, tag = 'scoped memory for tpu_custom_call.1']
    #allocation4 [shape = 'u8[16384]{0}', space=vmem, size = 0x4000, scoped, tag = 'output window, operand 1']
    #allocation5 [shape = 's32[2]{0}', space=sflag, size = 0x8, scoped, tag = 'scoped memory for tpu_custom_call.1']
    #allocation6 [shape = 'u8[2048]{0}', space=vmem, size = 0x800, scoped, tag = 'output window, operand 2']
    %18 = vsyncpa [#allocation3], 0
    %s19 = scalar_lea.sflag [#allocation3], 1
    %20 = vsyncpa %s19, 0
    %21 = vsyncpa [#allocation5], 0
    %s22 = scalar_lea.sflag [#allocation5], 1
    %23 = vsyncpa %s22, 0
    loop: start=0, step=1, limit=4
    $region2: #{tpu_custom_call.1} parent=1 // loop_pre_header
      _
    $region3: #{tpu_custom_call.1} parent=1 // loop_header
      %s25 = sphi 0, %s29
      %p26 = scmp.ge.s32.totalorder %s25, 4
      %s35 = sphi 0, %s37
      %s38 = sphi 0, %s35
      %s39 = sphi 0, %s38
      %s55 = sphi 0, %s39
      %s61 = sphi 0, %s63
      %s64 = sphi 0, %s61
      %s65 = sphi 0, %s64
      %s81 = sphi 0, %s65
      %s85 = sphi 0, %s85
      %s87 = sphi 0, %s85
      %s88 = sphi 0, %s87
      %s102 = sphi 0, %s88
      %s106 = sphi 0, %s106
      %s108 = sphi 0, %s106
      %s109 = sphi 0, %s108
      %s123 = sphi 0, %s109
      %s127 = sphi 0, %s127
      %s129 = sphi 0, %s127
      %s130 = sphi 0, %s129
      %s144 = sphi 0, %s130
      %s148 = sphi 0, %s148
      %s150 = sphi 0, %s148
      %s151 = sphi 0, %s150
      %s165 = sphi 0, %s151
      %s169 = sphi 0, %s169
      %s171 = sphi 0, %s169
      %s172 = sphi 0, %s171
      %s186 = sphi 0, %s172
      %s190 = sphi 0, %s190
      %s192 = sphi 0, %s190
      %s193 = sphi 0, %s192
      %s207 = sphi 0, %s193
      %s211 = sphi 0, %s211
      %s213 = sphi 0, %s211
      %s214 = sphi 0, %s213
      %s228 = sphi 0, %s214
      %s232 = sphi 0, %s232
      %s234 = sphi 0, %s232
      %s235 = sphi 0, %s234
      %s249 = sphi 0, %s235
      %s255 = sphi 0, %s257
      %s258 = sphi 0, %s255
      %s259 = sphi 0, %s258
      %s275 = sphi 0, %s259
      %s281 = sphi 0, %s283
      %s284 = sphi 0, %s281
      %s285 = sphi 0, %s284
      %s301 = sphi 0, %s285
      %s307 = sphi 0, %s309
      %s310 = sphi 0, %s307
      %s311 = sphi 0, %s310
      %s327 = sphi 0, %s311
    $region4: #{tpu_custom_call.1} parent=1 // loop_header_branch
      %28 = sbr.rel (%p26) target = $region8
    $region5: #{tpu_custom_call.1} parent=1 // loop_body
      %s30 = ssub.s32 %s25, 1
      %s31 = ssub.s32 %s25, 2
      %s32 = sadd.s32 %s25, 1
      %s33 = ssub.s32 %s25, %s32
      %p34 = scmp.eq.s32.totalorder %s33, 0
      %s36 = sadd.s32 %s35, 1
      %s37 = scalar_select %p34, %s35, %s36
      %p40 = pneg %p34
      %p41 = scmp.eq.s32.totalorder %s25, 1
      %p42 = por %p40, %p41
      %p43 = scmp.ne.s32.totalorder %s35, %s38
      %p44 = scmp.eq.s32.totalorder %s25, 0
      %p45 = por %p43, %p44
      %p46 = scmp.ne.s32.totalorder %s35, %s38
      %p47 = scmp.eq.s32.totalorder %s30, 1
      %p48 = por %p46, %p47
      %p49 = scmp.ne.s32.totalorder %s38, %s39
      %p50 = scmp.eq.s32.totalorder %s30, 0
      %p51 = por %p49, %p50
      %p52 = scmp.ne.s32.totalorder %s38, %s39
      %p53 = scmp.eq.s32.totalorder %s31, 1
      %p54 = por %p52, %p53
      %p56 = scmp.ne.s32.totalorder %s39, %s55
      %p57 = scmp.eq.s32.totalorder %s31, 0
      %p58 = por %p56, %p57
      %s59 = ssub.s32 %s25, %s32
      %p60 = scmp.eq.s32.totalorder %s59, 0
      %s62 = sadd.s32 %s61, 1
      %s63 = scalar_select %p60, %s61, %s62
      %p66 = pneg %p60
      %p67 = scmp.eq.s32.totalorder %s25, 1
      %p68 = por %p66, %p67
      %p69 = scmp.ne.s32.totalorder %s61, %s64
      %p70 = scmp.eq.s32.totalorder %s25, 0
      %p71 = por %p69, %p70
      %p72 = scmp.ne.s32.totalorder %s61, %s64
      %p73 = scmp.eq.s32.totalorder %s30, 1
      %p74 = por %p72, %p73
      %p75 = scmp.ne.s32.totalorder %s64, %s65
      %p76 = scmp.eq.s32.totalorder %s30, 0
      %p77 = por %p75, %p76
      %p78 = scmp.ne.s32.totalorder %s64, %s65
      %p79 = scmp.eq.s32.totalorder %s31, 1
      %p80 = por %p78, %p79
      %p82 = scmp.ne.s32.totalorder %s65, %s81
      %p83 = scmp.eq.s32.totalorder %s31, 0
      %p84 = por %p82, %p83
      %s86 = sadd.s32 %s85, 1
      %p89 = scmp.eq.s32.totalorder %s25, 1
      %p90 = scmp.ne.s32.totalorder %s85, %s87
      %p91 = scmp.eq.s32.totalorder %s25, 0
      %p92 = por %p90, %p91
      %p93 = scmp.ne.s32.totalorder %s85, %s87
      %p94 = scmp.eq.s32.totalorder %s30, 1
      %p95 = por %p93, %p94
      %p96 = scmp.ne.s32.totalorder %s87, %s88
      %p97 = scmp.eq.s32.totalorder %s30, 0
      %p98 = por %p96, %p97
      %p99 = scmp.ne.s32.totalorder %s87, %s88
      %p100 = scmp.eq.s32.totalorder %s31, 1
      %p101 = por %p99, %p100
      %p103 = scmp.ne.s32.totalorder %s88, %s102
      %p104 = scmp.eq.s32.totalorder %s31, 0
      %p105 = por %p103, %p104
      %s107 = sadd.s32 %s106, 1
      %p110 = scmp.eq.s32.totalorder %s25, 1
      %p111 = scmp.ne.s32.totalorder %s106, %s108
      %p112 = scmp.eq.s32.totalorder %s25, 0
      %p113 = por %p111, %p112
      %p114 = scmp.ne.s32.totalorder %s106, %s108
      %p115 = scmp.eq.s32.totalorder %s30, 1
      %p116 = por %p114, %p115
      %p117 = scmp.ne.s32.totalorder %s108, %s109
      %p118 = scmp.eq.s32.totalorder %s30, 0
      %p119 = por %p117, %p118
      %p120 = scmp.ne.s32.totalorder %s108, %s109
      %p121 = scmp.eq.s32.totalorder %s31, 1
      %p122 = por %p120, %p121
      %p124 = scmp.ne.s32.totalorder %s109, %s123
      %p125 = scmp.eq.s32.totalorder %s31, 0
      %p126 = por %p124, %p125
      %s128 = sadd.s32 %s127, 1
      %p131 = scmp.eq.s32.totalorder %s25, 1
      %p132 = scmp.ne.s32.totalorder %s127, %s129
      %p133 = scmp.eq.s32.totalorder %s25, 0
      %p134 = por %p132, %p133
      %p135 = scmp.ne.s32.totalorder %s127, %s129
      %p136 = scmp.eq.s32.totalorder %s30, 1
      %p137 = por %p135, %p136
      %p138 = scmp.ne.s32.totalorder %s129, %s130
      %p139 = scmp.eq.s32.totalorder %s30, 0
      %p140 = por %p138, %p139
      %p141 = scmp.ne.s32.totalorder %s129, %s130
      %p142 = scmp.eq.s32.totalorder %s31, 1
      %p143 = por %p141, %p142
      %p145 = scmp.ne.s32.totalorder %s130, %s144
      %p146 = scmp.eq.s32.totalorder %s31, 0
      %p147 = por %p145, %p146
      %s149 = sadd.s32 %s148, 1
      %p152 = scmp.eq.s32.totalorder %s25, 1
      %p153 = scmp.ne.s32.totalorder %s148, %s150
      %p154 = scmp.eq.s32.totalorder %s25, 0
      %p155 = por %p153, %p154
      %p156 = scmp.ne.s32.totalorder %s148, %s150
      %p157 = scmp.eq.s32.totalorder %s30, 1
      %p158 = por %p156, %p157
      %p159 = scmp.ne.s32.totalorder %s150, %s151
      %p160 = scmp.eq.s32.totalorder %s30, 0
      %p161 = por %p159, %p160
      %p162 = scmp.ne.s32.totalorder %s150, %s151
      %p163 = scmp.eq.s32.totalorder %s31, 1
      %p164 = por %p162, %p163
      %p166 = scmp.ne.s32.totalorder %s151, %s165
      %p167 = scmp.eq.s32.totalorder %s31, 0
      %p168 = por %p166, %p167
      %s170 = sadd.s32 %s169, 1
      %p173 = scmp.eq.s32.totalorder %s25, 1
      %p174 = scmp.ne.s32.totalorder %s169, %s171
      %p175 = scmp.eq.s32.totalorder %s25, 0
      %p176 = por %p174, %p175
      %p177 = scmp.ne.s32.totalorder %s169, %s171
      %p178 = scmp.eq.s32.totalorder %s30, 1
      %p179 = por %p177, %p178
      %p180 = scmp.ne.s32.totalorder %s171, %s172
      %p181 = scmp.eq.s32.totalorder %s30, 0
      %p182 = por %p180, %p181
      %p183 = scmp.ne.s32.totalorder %s171, %s172
      %p184 = scmp.eq.s32.totalorder %s31, 1
      %p185 = por %p183, %p184
      %p187 = scmp.ne.s32.totalorder %s172, %s186
      %p188 = scmp.eq.s32.totalorder %s31, 0
      %p189 = por %p187, %p188
      %s191 = sadd.s32 %s190, 1
      %p194 = scmp.eq.s32.totalorder %s25, 1
      %p195 = scmp.ne.s32.totalorder %s190, %s192
      %p196 = scmp.eq.s32.totalorder %s25, 0
      %p197 = por %p195, %p196
      %p198 = scmp.ne.s32.totalorder %s190, %s192
      %p199 = scmp.eq.s32.totalorder %s30, 1
      %p200 = por %p198, %p199
      %p201 = scmp.ne.s32.totalorder %s192, %s193
      %p202 = scmp.eq.s32.totalorder %s30, 0
      %p203 = por %p201, %p202
      %p204 = scmp.ne.s32.totalorder %s192, %s193
      %p205 = scmp.eq.s32.totalorder %s31, 1
      %p206 = por %p204, %p205
      %p208 = scmp.ne.s32.totalorder %s193, %s207
      %p209 = scmp.eq.s32.totalorder %s31, 0
      %p210 = por %p208, %p209
      %s212 = sadd.s32 %s211, 1
      %p215 = scmp.eq.s32.totalorder %s25, 1
      %p216 = scmp.ne.s32.totalorder %s211, %s213
      %p217 = scmp.eq.s32.totalorder %s25, 0
      %p218 = por %p216, %p217
      %p219 = scmp.ne.s32.totalorder %s211, %s213
      %p220 = scmp.eq.s32.totalorder %s30, 1
      %p221 = por %p219, %p220
      %p222 = scmp.ne.s32.totalorder %s213, %s214
      %p223 = scmp.eq.s32.totalorder %s30, 0
      %p224 = por %p222, %p223
      %p225 = scmp.ne.s32.totalorder %s213, %s214
      %p226 = scmp.eq.s32.totalorder %s31, 1
      %p227 = por %p225, %p226
      %p229 = scmp.ne.s32.totalorder %s214, %s228
      %p230 = scmp.eq.s32.totalorder %s31, 0
      %p231 = por %p229, %p230
      %s233 = sadd.s32 %s232, 1
      %p236 = scmp.eq.s32.totalorder %s25, 1
      %p237 = scmp.ne.s32.totalorder %s232, %s234
      %p238 = scmp.eq.s32.totalorder %s25, 0
      %p239 = por %p237, %p238
      %p240 = scmp.ne.s32.totalorder %s232, %s234
      %p241 = scmp.eq.s32.totalorder %s30, 1
      %p242 = por %p240, %p241
      %p243 = scmp.ne.s32.totalorder %s234, %s235
      %p244 = scmp.eq.s32.totalorder %s30, 0
      %p245 = por %p243, %p244
      %p246 = scmp.ne.s32.totalorder %s234, %s235
      %p247 = scmp.eq.s32.totalorder %s31, 1
      %p248 = por %p246, %p247
      %p250 = scmp.ne.s32.totalorder %s235, %s249
      %p251 = scmp.eq.s32.totalorder %s31, 0
      %p252 = por %p250, %p251
      %s253 = ssub.s32 %s25, %s32
      %p254 = scmp.eq.s32.totalorder %s253, 0
      %s256 = sadd.s32 %s255, 1
      %s257 = scalar_select %p254, %s255, %s256
      %p260 = pneg %p254
      %p261 = scmp.eq.s32.totalorder %s25, 1
      %p262 = por %p260, %p261
      %p263 = scmp.ne.s32.totalorder %s255, %s258
      %p264 = scmp.eq.s32.totalorder %s25, 0
      %p265 = por %p263, %p264
      %p266 = scmp.ne.s32.totalorder %s255, %s258
      %p267 = scmp.eq.s32.totalorder %s30, 1
      %p268 = por %p266, %p267
      %p269 = scmp.ne.s32.totalorder %s258, %s259
      %p270 = scmp.eq.s32.totalorder %s30, 0
      %p271 = por %p269, %p270
      %p272 = scmp.ne.s32.totalorder %s258, %s259
      %p273 = scmp.eq.s32.totalorder %s31, 1
      %p274 = por %p272, %p273
      %p276 = scmp.ne.s32.totalorder %s259, %s275
      %p277 = scmp.eq.s32.totalorder %s31, 0
      %p278 = por %p276, %p277
      %s279 = ssub.s32 %s25, %s32
      %p280 = scmp.eq.s32.totalorder %s279, 0
      %s282 = sadd.s32 %s281, 1
      %s283 = scalar_select %p280, %s281, %s282
      %p286 = pneg %p280
      %p287 = scmp.eq.s32.totalorder %s25, 1
      %p288 = por %p286, %p287
      %p289 = scmp.ne.s32.totalorder %s281, %s284
      %p290 = scmp.eq.s32.totalorder %s25, 0
      %p291 = por %p289, %p290
      %p292 = scmp.ne.s32.totalorder %s281, %s284
      %p293 = scmp.eq.s32.totalorder %s30, 1
      %p294 = por %p292, %p293
      %p295 = scmp.ne.s32.totalorder %s284, %s285
      %p296 = scmp.eq.s32.totalorder %s30, 0
      %p297 = por %p295, %p296
      %p298 = scmp.ne.s32.totalorder %s284, %s285
      %p299 = scmp.eq.s32.totalorder %s31, 1
      %p300 = por %p298, %p299
      %p302 = scmp.ne.s32.totalorder %s285, %s301
      %p303 = scmp.eq.s32.totalorder %s31, 0
      %p304 = por %p302, %p303
      %s305 = ssub.s32 %s25, %s32
      %p306 = scmp.eq.s32.totalorder %s305, 0
      %s308 = sadd.s32 %s307, 1
      %s309 = scalar_select %p306, %s307, %s308
      %p312 = pneg %p306
      %p313 = scmp.eq.s32.totalorder %s25, 1
      %p314 = por %p312, %p313
      %p315 = scmp.ne.s32.totalorder %s307, %s310
      %p316 = scmp.eq.s32.totalorder %s25, 0
      %p317 = por %p315, %p316
      %p318 = scmp.ne.s32.totalorder %s307, %s310
      %p319 = scmp.eq.s32.totalorder %s30, 1
      %p320 = por %p318, %p319
      %p321 = scmp.ne.s32.totalorder %s310, %s311
      %p322 = scmp.eq.s32.totalorder %s30, 0
      %p323 = por %p321, %p322
      %p324 = scmp.ne.s32.totalorder %s310, %s311
      %p325 = scmp.eq.s32.totalorder %s31, 1
      %p326 = por %p324, %p325
      %p328 = scmp.ne.s32.totalorder %s311, %s327
      %p329 = scmp.eq.s32.totalorder %s31, 0
      %p330 = por %p328, %p329
      %p331 = scmp.le.s32.totalorder 1, %s25
      %p332 = scmp.lt.s32.totalorder %s25, 3
      %p333 = pnand %p331, %p332
      %p334 = pneg %p333
      // Predicated region
      $region9: #{tpu_custom_call.1} parent=5 // pred_check
        _
      $region10: #{tpu_custom_call.1} parent=5 // pred_check_branch
        %336 = sbr.rel (%p333) target = $region12
      $region11: #{tpu_custom_call.1} parent=5 // pred_region
        %s337 = ssub.s32 %s25, 1
        // Predicated region
        $region13: #{tpu_custom_call.1} parent=11 // pred_check
          %p338 = pneg %p98
        $region14: #{tpu_custom_call.1} parent=11 // pred_check_branch
          %340 = sbr.rel (%p338) target = $region16
        $region15: #{tpu_custom_call.1} parent=11 // pred_region
          _
        $region16: #{tpu_custom_call.1} parent=11 // pred_fallthru
          _
        // Predicated region
        $region17: #{tpu_custom_call.1} parent=11 // pred_check
          %p341 = pneg %p119
        $region18: #{tpu_custom_call.1} parent=11 // pred_check_branch
          %343 = sbr.rel (%p341) target = $region20
        $region19: #{tpu_custom_call.1} parent=11 // pred_region
          _
        $region20: #{tpu_custom_call.1} parent=11 // pred_fallthru
          _
        // Predicated region
        $region21: #{tpu_custom_call.1} parent=11 // pred_check
          %p344 = pneg %p140
        $region22: #{tpu_custom_call.1} parent=11 // pred_check_branch
          %346 = sbr.rel (%p344) target = $region24
        $region23: #{tpu_custom_call.1} parent=11 // pred_region
          _
        $region24: #{tpu_custom_call.1} parent=11 // pred_fallthru
          _
        // Predicated region
        $region25: #{tpu_custom_call.1} parent=11 // pred_check
          %p347 = pneg %p161
        $region26: #{tpu_custom_call.1} parent=11 // pred_check_branch
          %349 = sbr.rel (%p347) target = $region28
        $region27: #{tpu_custom_call.1} parent=11 // pred_region
          _
        $region28: #{tpu_custom_call.1} parent=11 // pred_fallthru
          _
        // Predicated region
        $region29: #{tpu_custom_call.1} parent=11 // pred_check
          %p350 = pneg %p182
        $region30: #{tpu_custom_call.1} parent=11 // pred_check_branch
          %352 = sbr.rel (%p350) target = $region32
        $region31: #{tpu_custom_call.1} parent=11 // pred_region
          _
        $region32: #{tpu_custom_call.1} parent=11 // pred_fallthru
          _
        // Predicated region
        $region33: #{tpu_custom_call.1} parent=11 // pred_check
          %p353 = pneg %p203
        $region34: #{tpu_custom_call.1} parent=11 // pred_check_branch
          %355 = sbr.rel (%p353) target = $region36
        $region35: #{tpu_custom_call.1} parent=11 // pred_region
          _
        $region36: #{tpu_custom_call.1} parent=11 // pred_fallthru
          _
        // Predicated region
        $region37: #{tpu_custom_call.1} parent=11 // pred_check
          %p356 = pneg %p224
        $region38: #{tpu_custom_call.1} parent=11 // pred_check_branch
          %358 = sbr.rel (%p356) target = $region40
        $region39: #{tpu_custom_call.1} parent=11 // pred_region
          _
        $region40: #{tpu_custom_call.1} parent=11 // pred_fallthru
          _
        // Predicated region
        $region41: #{tpu_custom_call.1} parent=11 // pred_check
          %p359 = pneg %p245
        $region42: #{tpu_custom_call.1} parent=11 // pred_check_branch
          %361 = sbr.rel (%p359) target = $region44
        $region43: #{tpu_custom_call.1} parent=11 // pred_region
          _
        $region44: #{tpu_custom_call.1} parent=11 // pred_fallthru
          _
      $region12: #{tpu_custom_call.1} parent=5 // pred_fallthru
        _
      %p362 = scmp.lt.s32.totalorder %s25, 2
      // Predicated region
      $region45: #{tpu_custom_call.1} parent=5 // pred_check
        %p363 = pneg %p362
      $region46: #{tpu_custom_call.1} parent=5 // pred_check_branch
        %365 = sbr.rel (%p363) target = $region48
      $region47: #{tpu_custom_call.1} parent=5 // pred_region
        // Predicated region
        $region49: #{tpu_custom_call.1} parent=47 // pred_check
          %p366 = pneg %p45
        $region50: #{tpu_custom_call.1} parent=47 // pred_check_branch
          %368 = sbr.rel (%p366) target = $region52
        $region51: #{tpu_custom_call.1} parent=47 // pred_region
          %s369 = smul.u32 2, %s25
          %p370 = scmp.lt.s32.totalorder %s369, 3
          %s371 = scalar_select %p370, %s369, 3
          %s372 = smul.addr %s371, 8
          %s373 = scalar_lea.vmem %s0, %s372
          %s374 = smul.u32 2, %s25
        $region52: #{tpu_custom_call.1} parent=47 // pred_fallthru
          _
        // Predicated region
        $region53: #{tpu_custom_call.1} parent=47 // pred_check
          %p375 = pneg %p71
        $region54: #{tpu_custom_call.1} parent=47 // pred_check_branch
          %377 = sbr.rel (%p375) target = $region56
        $region55: #{tpu_custom_call.1} parent=47 // pred_region
          %s378 = smul.u32 2, %s25
          %p379 = scmp.lt.s32.totalorder %s378, 3
          %s380 = scalar_select %p379, %s378, 3
          %s381 = smul.addr %s380, 8
          %s382 = scalar_lea.vmem %s1, %s381
          %s383 = smul.u32 2, %s25
        $region56: #{tpu_custom_call.1} parent=47 // pred_fallthru
          _
      $region48: #{tpu_custom_call.1} parent=5 // pred_fallthru
        _
      %p384 = scmp.le.s32.totalorder 1, %s25
      %p385 = scmp.lt.s32.totalorder %s25, 3
      %p386 = pnand %p384, %p385
      %p387 = pneg %p386
      // Predicated region
      $region57: #{tpu_custom_call.1} parent=5 // pred_check
        _
      $region58: #{tpu_custom_call.1} parent=5 // pred_check_branch
        %389 = sbr.rel (%p386) target = $region60
      $region59: #{tpu_custom_call.1} parent=5 // pred_region
        %s390 = ssub.s32 %s25, 1
        %s391 = smul.u32 2, %s30
        %p392 = scmp.lt.s32.totalorder %s391, 3
        %s393 = scalar_select %p392, %s391, 3
        %s394 = smul.addr %s393, 8
        %s395 = scalar_lea.vmem %s0, %s394
        %p396 = pneg %p51
        %p397 = pneg %p48
        %s398 = smul.u32 2, %s30
        %p399 = scmp.lt.s32.totalorder %s398, 3
        %s400 = scalar_select %p399, %s398, 3
        %s401 = smul.addr %s400, 8
        %s402 = scalar_lea.vmem %s1, %s401
        %p403 = pneg %p77
        %p404 = pneg %p74
        %p405 = pneg %p98
        %p406 = pneg %p95
        %p407 = pneg %p119
        %p408 = pneg %p116
        %p409 = pneg %p140
        %p410 = pneg %p137
        %p411 = pneg %p161
        %p412 = pneg %p158
        %p413 = pneg %p182
        %p414 = pneg %p179
        %p415 = pneg %p203
        %p416 = pneg %p200
        %p417 = pneg %p224
        %p418 = pneg %p221
        %p419 = pneg %p245
        %p420 = pneg %p242
        %p421 = pneg %p271
        %p422 = pneg %p268
        %s423 = sand.u32 %s258, 1
        %s424 = scalar_lea.sflag [#allocation3], %s423
        %s425 = sand.u32 %s258, 1
        %s426 = smul.addr %s425, 16
        %s427 = scalar_lea.vmem [#allocation2], %s426
        %p428 = pneg %p297
        %p429 = pneg %p294
        %s430 = sand.u32 %s30, 1
        %s431 = scalar_lea.sflag [#allocation5], %s430
        %s432 = sand.u32 %s284, 1
        %s433 = smul.addr %s432, 16
        %s434 = scalar_lea.vmem [#allocation4], %s433
        %p435 = pneg %p323
        %p436 = pneg %p320
        %s437 = sand.u32 %s30, 1
        %s438 = scalar_lea.sflag [#allocation5], %s437
        %s439 = sand.u32 %s310, 1
        %s440 = smul.addr %s439, 2
        %s441 = scalar_lea.vmem [#allocation6], %s440
        %s442 = smul.u32 2, %s30
        %p443 = scmp.lt.s32.totalorder %s442, 3
        %s444 = scalar_select %p443, %s442, 3
        %s445 = smul.addr %s444, 8
        %s446 = scalar_lea.vmem %s0, %s445
        %s447 = smul.u32 2, %s30
        %s448 = smul.u32 2, %s30
        %p449 = scmp.lt.s32.totalorder %s448, 3
        %s450 = scalar_select %p449, %s448, 3
        %s451 = smul.addr %s450, 8
        %s452 = scalar_lea.vmem %s1, %s451
        %s453 = smul.u32 2, %s30
        %s454 = smul.u32 2, %s30
        %s455 = smul.u32 2, %s30
        %s456 = smul.u32 2, %s30
        %v457 = vld [vmem:[%s446] sm:$0xff]
        %v458 = vld [vmem:[%s446 + $0x8] sm:$0xff]
        %v459 = vld [vmem:[%s452] sm:$0xff]
        %v460 = vld [vmem:[%s452 + $0x8] sm:$0xff]
        %v461 = vld [vmem:[%s2] sm:$0xff]
        %v462 = vld [vmem:[%s2 + $0x8] sm:$0xff]
        %v463 = vld [vmem:[%s2 + $0x10] sm:$0xff]
        %v464 = vld [vmem:[%s2 + $0x18] sm:$0xff]
        %v465 = vld [vmem:[%s3] sm:$0xff]
        %v466 = vld [vmem:[%s3 + $0x8] sm:$0xff]
        %v467 = vld [vmem:[%s3 + $0x10] sm:$0xff]
        %v468 = vld [vmem:[%s3 + $0x18] sm:$0xff]
        %470 = vset.pattern.permute.xlu0 0
        %471 = vperm.xlu0 %470, %v465
        %v472 = vpop.permute.xlu0 %471
        %475 = vset.pattern.permute.xlu0 0
        %476 = vperm.xlu0 %475, %v466
        %v477 = vpop.permute.xlu0 %476
        %480 = vset.pattern.permute.xlu0 0
        %481 = vperm.xlu0 %480, %v467
        %v482 = vpop.permute.xlu0 %481
        %485 = vset.pattern.permute.xlu0 0
        %486 = vperm.xlu0 %485, %v468
        %v487 = vpop.permute.xlu0 %486
        %vm489 = vcmask 64512
        %v491 = vsel %vm489, %v461, 0
        %v494 = vsel %vm489, %v462, 0
        %v497 = vsel %vm489, %v463, 0
        %v500 = vsel %vm489, %v464, 0
        %502 = vmatprep.subr.mxu0 %v458
        %503 = vmatpush1.msra.mxu0 %v457
        %504 = vmatprep.subr.mxu0 0.0
        %505 = vmatpush1.msra.mxu0 0.0
        %506 = vmatprep.subr.mxu0 0.0
        %507 = vmatpush1.msra.mxu0 0.0
        %508 = vmatprep.subr.mxu0 0.0
        %509 = vmatpush1.msra.mxu0 0.0
        %510 = vmatprep.subr.mxu0 0.0
        %511 = vmatpush1.msra.mxu0 0.0
        %512 = vmatprep.subr.mxu0 0.0
        %513 = vmatpush1.msra.mxu0 0.0
        %514 = vmatprep.subr.mxu0 0.0
        %515 = vmatpush1.msra.mxu0 0.0
        %516 = vmatprep.subr.mxu0 0.0
        %517 = vmatpush1.msra.mxu0 0.0
        %518 = vmatprep.subr.mxu0 0.0
        %519 = vmatpush1.msra.mxu0 0.0
        %520 = vmatprep.subr.mxu0 0.0
        %521 = vmatpush1.msra.mxu0 0.0
        %522 = vmatprep.subr.mxu0 0.0
        %523 = vmatpush1.msra.mxu0 0.0
        %524 = vmatprep.subr.mxu0 0.0
        %525 = vmatpush1.msra.mxu0 0.0
        %526 = vmatprep.subr.mxu0 0.0
        %527 = vmatpush1.msra.mxu0 0.0
        %528 = vmatprep.subr.mxu0 0.0
        %529 = vmatpush1.msra.mxu0 0.0
        %530 = vmatprep.subr.mxu0 0.0
        %531 = vmatpush1.msra.mxu0 0.0
        %532 = vmatprep.subr.mxu0 0.0
        %533 = vmatpush1.msra.mxu0 0.0
        %534 = vmatprep.subr.mxu0 0.0
        %535 = vmatpush1.msra.mxu0 0.0
        %536 = vmatprep.subr.mxu0 0.0
        %537 = vmatpush1.msra.mxu0 0.0
        %538 = vmatprep.subr.mxu0 0.0
        %539 = vmatpush1.msra.mxu0 0.0
        %540 = vmatprep.subr.mxu0 0.0
        %541 = vmatpush1.msra.mxu0 0.0
        %542 = vmatprep.subr.mxu0 0.0
        %543 = vmatpush1.msra.mxu0 0.0
        %544 = vmatprep.subr.mxu0 0.0
        %545 = vmatpush1.msra.mxu0 0.0
        %546 = vmatprep.subr.mxu0 0.0
        %547 = vmatpush1.msra.mxu0 0.0
        %548 = vmatprep.subr.mxu0 0.0
        %549 = vmatpush1.msra.mxu0 0.0
        %550 = vmatprep.subr.mxu0 0.0
        %551 = vmatpush1.msra.mxu0 0.0
        %552 = vmatprep.subr.mxu0 0.0
        %553 = vmatpush1.msra.mxu0 0.0
        %554 = vmatprep.subr.mxu0 0.0
        %555 = vmatpush1.msra.mxu0 0.0
        %556 = vmatprep.subr.mxu0 0.0
        %557 = vmatpush1.msra.mxu0 0.0
        %558 = vmatprep.subr.mxu0 0.0
        %559 = vmatpush1.msra.mxu0 0.0
        %560 = vmatprep.subr.mxu0 0.0
        %561 = vmatpush1.msra.mxu0 0.0
        %562 = vmatprep.subr.mxu0 0.0
        %563 = vmatpush1.msra.mxu0 0.0
        %564 = vmatprep.subr.mxu0 0.0
        %565 = vmatpush1.msra.mxu0 0.0
        %566 = vmatprep.mubr.f32.mxu0 0.0
        %567 = vmatmul.mubr.f32.gmra.mrb[0].mxu0 %v491
        %v568 = vpop.f32.mrb[0].mxu0
        %v569 = vadd.f32 %v472, %v568
        %v570 = vpop.f32.mrb[0].mxu0
        %v571 = vadd.f32 %v472, %v570
        %572 = vmatprep.mubr.f32.mxu0 0.0
        %573 = vmatmul.mubr.f32.gmra.mrb[0].mxu0 %v494
        %v574 = vpop.f32.mrb[0].mxu0
        %v575 = vadd.f32 %v477, %v574
        %v576 = vpop.f32.mrb[0].mxu0
        %v577 = vadd.f32 %v477, %v576
        %578 = vmatprep.mubr.f32.mxu0 0.0
        %579 = vmatmul.mubr.f32.gmra.mrb[0].mxu0 %v497
        %v580 = vpop.f32.mrb[0].mxu0
        %v581 = vadd.f32 %v482, %v580
        %v582 = vpop.f32.mrb[0].mxu0
        %v583 = vadd.f32 %v482, %v582
        %584 = vmatprep.mubr.f32.mxu0 0.0
        %585 = vmatmul.mubr.f32.gmra.mrb[0].mxu0 %v500
        %v586 = vpop.f32.mrb[0].mxu0
        %v587 = vadd.f32 %v487, %v586
        %v588 = vpop.f32.mrb[0].mxu0
        %v589 = vadd.f32 %v487, %v588
        %590 = vdwg.mxu0
        %v591 = vmax.f32 %v569, 0.0
        %v592 = vmax.f32 %v571, 0.0
        %v593 = vmax.f32 %v575, 0.0
        %v594 = vmax.f32 %v577, 0.0
        %v595 = vmax.f32 %v581, 0.0
        %v596 = vmax.f32 %v583, 0.0
        %v597 = vmax.f32 %v587, 0.0
        %v598 = vmax.f32 %v589, 0.0
        %v599 = vld [vmem:[%s4] sm:$0xff]
        %v600 = vld [vmem:[%s4 + $0x8] sm:$0xff]
        %v601 = vld [vmem:[%s4 + $0x10] sm:$0xff]
        %v602 = vld [vmem:[%s4 + $0x18] sm:$0xff]
        %v603 = vld [vmem:[%s5] sm:$0xff]
        %v604 = vld [vmem:[%s5 + $0x8] sm:$0xff]
        %v605 = vld [vmem:[%s5 + $0x10] sm:$0xff]
        %v606 = vld [vmem:[%s5 + $0x18] sm:$0xff]
        %608 = vset.pattern.permute.xlu0 0
        %609 = vperm.xlu0 %608, %v603
        %v610 = vpop.permute.xlu0 %609
        %613 = vset.pattern.permute.xlu0 0
        %614 = vperm.xlu0 %613, %v604
        %v615 = vpop.permute.xlu0 %614
        %618 = vset.pattern.permute.xlu0 0
        %619 = vperm.xlu0 %618, %v605
        %v620 = vpop.permute.xlu0 %619
        %623 = vset.pattern.permute.xlu0 0
        %624 = vperm.xlu0 %623, %v606
        %v625 = vpop.permute.xlu0 %624
        %vm627 = vcmask 261120
        %v629 = vsel %vm627, %v599, 0
        %v632 = vsel %vm627, %v600, 0
        %v635 = vsel %vm627, %v601, 0
        %v638 = vsel %vm627, %v602, 0
        %640 = vmatprep.subr.mxu0 %v592
        %641 = vmatpush1.msra.mxu0 %v591
        %642 = vmatprep.subr.mxu0 %v594
        %643 = vmatpush1.msra.mxu0 %v593
        %644 = vmatprep.subr.mxu0 %v596
        %645 = vmatpush1.msra.mxu0 %v595
        %646 = vmatprep.subr.mxu0 %v598
        %647 = vmatpush1.msra.mxu0 %v597
        %648 = vmatprep.subr.mxu0 0.0
        %649 = vmatpush1.msra.mxu0 0.0
        %650 = vmatprep.subr.mxu0 0.0
        %651 = vmatpush1.msra.mxu0 0.0
        %652 = vmatprep.subr.mxu0 0.0
        %653 = vmatpush1.msra.mxu0 0.0
        %654 = vmatprep.subr.mxu0 0.0
        %655 = vmatpush1.msra.mxu0 0.0
        %656 = vmatprep.subr.mxu0 0.0
        %657 = vmatpush1.msra.mxu0 0.0
        %658 = vmatprep.subr.mxu0 0.0
        %659 = vmatpush1.msra.mxu0 0.0
        %660 = vmatprep.subr.mxu0 0.0
        %661 = vmatpush1.msra.mxu0 0.0
        %662 = vmatprep.subr.mxu0 0.0
        %663 = vmatpush1.msra.mxu0 0.0
        %664 = vmatprep.subr.mxu0 0.0
        %665 = vmatpush1.msra.mxu0 0.0
        %666 = vmatprep.subr.mxu0 0.0
        %667 = vmatpush1.msra.mxu0 0.0
        %668 = vmatprep.subr.mxu0 0.0
        %669 = vmatpush1.msra.mxu0 0.0
        %670 = vmatprep.subr.mxu0 0.0
        %671 = vmatpush1.msra.mxu0 0.0
        %672 = vmatprep.subr.mxu0 0.0
        %673 = vmatpush1.msra.mxu0 0.0
        %674 = vmatprep.subr.mxu0 0.0
        %675 = vmatpush1.msra.mxu0 0.0
        %676 = vmatprep.subr.mxu0 0.0
        %677 = vmatpush1.msra.mxu0 0.0
        %678 = vmatprep.subr.mxu0 0.0
        %679 = vmatpush1.msra.mxu0 0.0
        %680 = vmatprep.subr.mxu0 0.0
        %681 = vmatpush1.msra.mxu0 0.0
        %682 = vmatprep.subr.mxu0 0.0
        %683 = vmatpush1.msra.mxu0 0.0
        %684 = vmatprep.subr.mxu0 0.0
        %685 = vmatpush1.msra.mxu0 0.0
        %686 = vmatprep.subr.mxu0 0.0
        %687 = vmatpush1.msra.mxu0 0.0
        %688 = vmatprep.subr.mxu0 0.0
        %689 = vmatpush1.msra.mxu0 0.0
        %690 = vmatprep.subr.mxu0 0.0
        %691 = vmatpush1.msra.mxu0 0.0
        %692 = vmatprep.subr.mxu0 0.0
        %693 = vmatpush1.msra.mxu0 0.0
        %694 = vmatprep.subr.mxu0 0.0
        %695 = vmatpush1.msra.mxu0 0.0
        %696 = vmatprep.subr.mxu0 0.0
        %697 = vmatpush1.msra.mxu0 0.0
        %698 = vmatprep.subr.mxu0 0.0
        %699 = vmatpush1.msra.mxu0 0.0
        %700 = vmatprep.subr.mxu0 0.0
        %701 = vmatpush1.msra.mxu0 0.0
        %702 = vmatprep.subr.mxu0 0.0
        %703 = vmatpush1.msra.mxu0 0.0
        %704 = vmatprep.mubr.f32.mxu0 0.0
        %705 = vmatmul.mubr.f32.gmra.mrb[0].mxu0 %v629
        %v706 = vpop.f32.mrb[0].mxu0
        %v707 = vadd.f32 %v610, %v706
        %v708 = vpop.f32.mrb[0].mxu0
        %v709 = vadd.f32 %v610, %v708
        %710 = vmatprep.mubr.f32.mxu0 0.0
        %711 = vmatmul.mubr.f32.gmra.mrb[0].mxu0 %v632
        %v712 = vpop.f32.mrb[0].mxu0
        %v713 = vadd.f32 %v615, %v712
        %v714 = vpop.f32.mrb[0].mxu0
        %v715 = vadd.f32 %v615, %v714
        %716 = vmatprep.mubr.f32.mxu0 0.0
        %717 = vmatmul.mubr.f32.gmra.mrb[0].mxu0 %v635
        %v718 = vpop.f32.mrb[0].mxu0
        %v719 = vadd.f32 %v620, %v718
        %v720 = vpop.f32.mrb[0].mxu0
        %v721 = vadd.f32 %v620, %v720
        %722 = vmatprep.mubr.f32.mxu0 0.0
        %723 = vmatmul.mubr.f32.gmra.mrb[0].mxu0 %v638
        %v724 = vpop.f32.mrb[0].mxu0
        %v725 = vadd.f32 %v625, %v724
        %v726 = vpop.f32.mrb[0].mxu0
        %v727 = vadd.f32 %v625, %v726
        %728 = vdwg.mxu0
        %v729 = vmax.f32 %v707, 0.0
        %v730 = vmax.f32 %v709, 0.0
        %v731 = vmax.f32 %v713, 0.0
        %v732 = vmax.f32 %v715, 0.0
        %v733 = vmax.f32 %v719, 0.0
        %v734 = vmax.f32 %v721, 0.0
        %v735 = vmax.f32 %v725, 0.0
        %v736 = vmax.f32 %v727, 0.0
        %v737 = vld [vmem:[%s6] sm:$0xff]
        %v738 = vld [vmem:[%s7] sm:$0xff]
        %740 = vset.pattern.permute.xlu0 0
        %741 = vperm.xlu0 %740, %v738
        %v742 = vpop.permute.xlu0 %741
        %v745 = vsel %vm627, %v737, 0
        %747 = vmatprep.subr.mxu0 %v730
        %748 = vmatpush1.msra.mxu0 %v729
        %749 = vmatprep.subr.mxu0 %v732
        %750 = vmatpush1.msra.mxu0 %v731
        %751 = vmatprep.subr.mxu0 %v734
        %752 = vmatpush1.msra.mxu0 %v733
        %753 = vmatprep.subr.mxu0 %v736
        %754 = vmatpush1.msra.mxu0 %v735
        %755 = vmatprep.subr.mxu0 0.0
        %756 = vmatpush1.msra.mxu0 0.0
        %757 = vmatprep.subr.mxu0 0.0
        %758 = vmatpush1.msra.mxu0 0.0
        %759 = vmatprep.subr.mxu0 0.0
        %760 = vmatpush1.msra.mxu0 0.0
        %761 = vmatprep.subr.mxu0 0.0
        %762 = vmatpush1.msra.mxu0 0.0
        %763 = vmatprep.subr.mxu0 0.0
        %764 = vmatpush1.msra.mxu0 0.0
        %765 = vmatprep.subr.mxu0 0.0
        %766 = vmatpush1.msra.mxu0 0.0
        %767 = vmatprep.subr.mxu0 0.0
        %768 = vmatpush1.msra.mxu0 0.0
        %769 = vmatprep.subr.mxu0 0.0
        %770 = vmatpush1.msra.mxu0 0.0
        %771 = vmatprep.subr.mxu0 0.0
        %772 = vmatpush1.msra.mxu0 0.0
        %773 = vmatprep.subr.mxu0 0.0
        %774 = vmatpush1.msra.mxu0 0.0
        %775 = vmatprep.subr.mxu0 0.0
        %776 = vmatpush1.msra.mxu0 0.0
        %777 = vmatprep.subr.mxu0 0.0
        %778 = vmatpush1.msra.mxu0 0.0
        %779 = vmatprep.subr.mxu0 0.0
        %780 = vmatpush1.msra.mxu0 0.0
        %781 = vmatprep.subr.mxu0 0.0
        %782 = vmatpush1.msra.mxu0 0.0
        %783 = vmatprep.subr.mxu0 0.0
        %784 = vmatpush1.msra.mxu0 0.0
        %785 = vmatprep.subr.mxu0 0.0
        %786 = vmatpush1.msra.mxu0 0.0
        %787 = vmatprep.subr.mxu0 0.0
        %788 = vmatpush1.msra.mxu0 0.0
        %789 = vmatprep.subr.mxu0 0.0
        %790 = vmatpush1.msra.mxu0 0.0
        %791 = vmatprep.subr.mxu0 0.0
        %792 = vmatpush1.msra.mxu0 0.0
        %793 = vmatprep.subr.mxu0 0.0
        %794 = vmatpush1.msra.mxu0 0.0
        %795 = vmatprep.subr.mxu0 0.0
        %796 = vmatpush1.msra.mxu0 0.0
        %797 = vmatprep.subr.mxu0 0.0
        %798 = vmatpush1.msra.mxu0 0.0
        %799 = vmatprep.subr.mxu0 0.0
        %800 = vmatpush1.msra.mxu0 0.0
        %801 = vmatprep.subr.mxu0 0.0
        %802 = vmatpush1.msra.mxu0 0.0
        %803 = vmatprep.subr.mxu0 0.0
        %804 = vmatpush1.msra.mxu0 0.0
        %805 = vmatprep.subr.mxu0 0.0
        %806 = vmatpush1.msra.mxu0 0.0
        %807 = vmatprep.subr.mxu0 0.0
        %808 = vmatpush1.msra.mxu0 0.0
        %809 = vmatprep.subr.mxu0 0.0
        %810 = vmatpush1.msra.mxu0 0.0
        %811 = vmatprep.mubr.f32.mxu0 0.0
        %812 = vmatmul.mubr.f32.gmra.mrb[0].mxu0 %v745
        %v813 = vpop.f32.mrb[0].mxu0
        %v814 = vadd.f32 %v742, %v813
        %v815 = vpop.f32.mrb[0].mxu0
        %v816 = vadd.f32 %v742, %v815
        %817 = vdwg.mxu0
        %v818 = vld [vmem:[%s8] sm:$0xff]
        %v819 = vld [vmem:[%s9] sm:$0xff]
        %821 = vset.pattern.permute.xlu0 0
        %822 = vperm.xlu0 %821, %v819
        %v823 = vpop.permute.xlu0 %822
        %v826 = vsel %vm627, %v818, 0
        %828 = vmatprep.subr.mxu0 %v730
        %829 = vmatpush1.msra.mxu0 %v729
        %830 = vmatprep.subr.mxu0 %v732
        %831 = vmatpush1.msra.mxu0 %v731
        %832 = vmatprep.subr.mxu0 %v734
        %833 = vmatpush1.msra.mxu0 %v733
        %834 = vmatprep.subr.mxu0 %v736
        %835 = vmatpush1.msra.mxu0 %v735
        %836 = vmatprep.subr.mxu0 0.0
        %837 = vmatpush1.msra.mxu0 0.0
        %838 = vmatprep.subr.mxu0 0.0
        %839 = vmatpush1.msra.mxu0 0.0
        %840 = vmatprep.subr.mxu0 0.0
        %841 = vmatpush1.msra.mxu0 0.0
        %842 = vmatprep.subr.mxu0 0.0
        %843 = vmatpush1.msra.mxu0 0.0
        %844 = vmatprep.subr.mxu0 0.0
        %845 = vmatpush1.msra.mxu0 0.0
        %846 = vmatprep.subr.mxu0 0.0
        %847 = vmatpush1.msra.mxu0 0.0
        %848 = vmatprep.subr.mxu0 0.0
        %849 = vmatpush1.msra.mxu0 0.0
        %850 = vmatprep.subr.mxu0 0.0
        %851 = vmatpush1.msra.mxu0 0.0
        %852 = vmatprep.subr.mxu0 0.0
        %853 = vmatpush1.msra.mxu0 0.0
        %854 = vmatprep.subr.mxu0 0.0
        %855 = vmatpush1.msra.mxu0 0.0
        %856 = vmatprep.subr.mxu0 0.0
        %857 = vmatpush1.msra.mxu0 0.0
        %858 = vmatprep.subr.mxu0 0.0
        %859 = vmatpush1.msra.mxu0 0.0
        %860 = vmatprep.subr.mxu0 0.0
        %861 = vmatpush1.msra.mxu0 0.0
        %862 = vmatprep.subr.mxu0 0.0
        %863 = vmatpush1.msra.mxu0 0.0
        %864 = vmatprep.subr.mxu0 0.0
        %865 = vmatpush1.msra.mxu0 0.0
        %866 = vmatprep.subr.mxu0 0.0
        %867 = vmatpush1.msra.mxu0 0.0
        %868 = vmatprep.subr.mxu0 0.0
        %869 = vmatpush1.msra.mxu0 0.0
        %870 = vmatprep.subr.mxu0 0.0
        %871 = vmatpush1.msra.mxu0 0.0
        %872 = vmatprep.subr.mxu0 0.0
        %873 = vmatpush1.msra.mxu0 0.0
        %874 = vmatprep.subr.mxu0 0.0
        %875 = vmatpush1.msra.mxu0 0.0
        %876 = vmatprep.subr.mxu0 0.0
        %877 = vmatpush1.msra.mxu0 0.0
        %878 = vmatprep.subr.mxu0 0.0
        %879 = vmatpush1.msra.mxu0 0.0
        %880 = vmatprep.subr.mxu0 0.0
        %881 = vmatpush1.msra.mxu0 0.0
        %882 = vmatprep.subr.mxu0 0.0
        %883 = vmatpush1.msra.mxu0 0.0
        %884 = vmatprep.subr.mxu0 0.0
        %885 = vmatpush1.msra.mxu0 0.0
        %886 = vmatprep.subr.mxu0 0.0
        %887 = vmatpush1.msra.mxu0 0.0
        %888 = vmatprep.subr.mxu0 0.0
        %889 = vmatpush1.msra.mxu0 0.0
        %890 = vmatprep.subr.mxu0 0.0
        %891 = vmatpush1.msra.mxu0 0.0
        %892 = vmatprep.mubr.f32.mxu0 0.0
        %893 = vmatmul.mubr.f32.gmra.mrb[0].mxu0 %v826
        %v894 = vpop.f32.mrb[0].mxu0
        %v895 = vadd.f32 %v823, %v894
        %v896 = vpop.f32.mrb[0].mxu0
        %v897 = vadd.f32 %v823, %v896
        %898 = vdwg.mxu0
        %v899 = vadd.f32 %v895, 2.0
        %v900 = vadd.f32 %v897, 2.0
        %v901 = vmin.f32 %v899, 0.0
        %v902 = vmin.f32 %v900, 0.0
        %v903 = vand.u32 2147483647, %v899
        %v904 = vand.u32 2147483647, %v900
        %v905 = vsub.f32 0.0, %v903
        %v906 = vsub.f32 0.0, %v904
        %v907 = vmul.f32 %v905, 1.442695
        %v908 = vpow.pop %v907
        %v909 = vmul.f32 %v906, 1.442695
        %v910 = vpow.pop %v909
        %v911 = vadd.f32 %v908, 1.0
        %v912 = vlog2.pop %v911
        %v913 = vmul.f32 %v912, 0.6931472
        %v914 = vmul.f32 -0.5, %v908
        %v915 = vadd.f32 %v914, 1.0
        %v916 = vmul.f32 %v915, %v908
        %v917 = vand.u32 2147483647, %v908
        %vm918 = vcmp.lt.f32.partialorder %v917, 0.0004427343
        %v919 = vsel %vm918, %v916, %v913
        %v920 = vadd.f32 %v910, 1.0
        %v921 = vlog2.pop %v920
        %v922 = vmul.f32 %v921, 0.6931472
        %v923 = vmul.f32 -0.5, %v910
        %v924 = vadd.f32 %v923, 1.0
        %v925 = vmul.f32 %v924, %v910
        %v926 = vand.u32 2147483647, %v910
        %vm927 = vcmp.lt.f32.partialorder %v926, 0.0004427343
        %v928 = vsel %vm927, %v925, %v922
        %v929 = vsub.f32 %v901, %v919
        %v930 = vsub.f32 %v902, %v928
        %v931 = vmul.f32 %v929, 1.442695
        %v932 = vpow.pop %v931
        %v933 = vmul.f32 %v930, 1.442695
        %v934 = vpow.pop %v933
        %v935 = vmul.f32 %v459, %v932
        %v936 = vmul.f32 %v460, %v934
        %v937 = vadd.f32 %v935, %v814
        %v938 = vadd.f32 %v936, %v816
        %v939 = vrot.slane %v929, 4
        %v940 = vadd.f32 %v929, %v939
        %v941 = vrot.slane %v940, 2
        %v942 = vadd.f32 %v940, %v941
        %v943 = vrot.slane %v942, 1
        %v944 = vadd.f32 %v942, %v943
        %v945 = vrot.slane %v930, 4
        %v946 = vadd.f32 %v930, %v945
        %v947 = vrot.slane %v946, 2
        %v948 = vadd.f32 %v946, %v947
        %v949 = vrot.slane %v948, 1
        %v950 = vadd.f32 %v948, %v949
        %v951 = vadd.f32 %v944, 0.0
        %v952 = vadd.f32 %v950, 0.0
        %s953 = scalar_lea.vmem %s2, 32
        %v954 = vld [vmem:[%s953] sm:$0xff]
        %v955 = vld [vmem:[%s953 + $0x8] sm:$0xff]
        %v956 = vld [vmem:[%s953 + $0x10] sm:$0xff]
        %v957 = vld [vmem:[%s953 + $0x18] sm:$0xff]
        %s958 = scalar_lea.vmem %s3, 32
        %v959 = vld [vmem:[%s958] sm:$0xff]
        %v960 = vld [vmem:[%s958 + $0x8] sm:$0xff]
        %v961 = vld [vmem:[%s958 + $0x10] sm:$0xff]
        %v962 = vld [vmem:[%s958 + $0x18] sm:$0xff]
        %964 = vset.pattern.permute.xlu0 0
        %965 = vperm.xlu0 %964, %v959
        %v966 = vpop.permute.xlu0 %965
        %969 = vset.pattern.permute.xlu0 0
        %970 = vperm.xlu0 %969, %v960
        %v971 = vpop.permute.xlu0 %970
        %974 = vset.pattern.permute.xlu0 0
        %975 = vperm.xlu0 %974, %v961
        %v976 = vpop.permute.xlu0 %975
        %979 = vset.pattern.permute.xlu0 0
        %980 = vperm.xlu0 %979, %v962
        %v981 = vpop.permute.xlu0 %980
        %v984 = vsel %vm489, %v954, 0
        %v987 = vsel %vm489, %v955, 0
        %v990 = vsel %vm489, %v956, 0
        %v993 = vsel %vm489, %v957, 0
        %995 = vmatprep.subr.mxu0 %v458
        %996 = vmatpush1.msra.mxu0 %v457
        %997 = vmatprep.subr.mxu0 0.0
        %998 = vmatpush1.msra.mxu0 0.0
        %999 = vmatprep.subr.mxu0 0.0
        %1000 = vmatpush1.msra.mxu0 0.0
        %1001 = vmatprep.subr.mxu0 0.0
        %1002 = vmatpush1.msra.mxu0 0.0
        %1003 = vmatprep.subr.mxu0 0.0
        %1004 = vmatpush1.msra.mxu0 0.0
        %1005 = vmatprep.subr.mxu0 0.0
        %1006 = vmatpush1.msra.mxu0 0.0
        %1007 = vmatprep.subr.mxu0 0.0
        %1008 = vmatpush1.msra.mxu0 0.0
        %1009 = vmatprep.subr.mxu0 0.0
        %1010 = vmatpush1.msra.mxu0 0.0
        %1011 = vmatprep.subr.mxu0 0.0
        %1012 = vmatpush1.msra.mxu0 0.0
        %1013 = vmatprep.subr.mxu0 0.0
        %1014 = vmatpush1.msra.mxu0 0.0
        %1015 = vmatprep.subr.mxu0 0.0
        %1016 = vmatpush1.msra.mxu0 0.0
        %1017 = vmatprep.subr.mxu0 0.0
        %1018 = vmatpush1.msra.mxu0 0.0
        %1019 = vmatprep.subr.mxu0 0.0
        %1020 = vmatpush1.msra.mxu0 0.0
        %1021 = vmatprep.subr.mxu0 0.0
        %1022 = vmatpush1.msra.mxu0 0.0
        %1023 = vmatprep.subr.mxu0 0.0
        %1024 = vmatpush1.msra.mxu0 0.0
        %1025 = vmatprep.subr.mxu0 0.0
        %1026 = vmatpush1.msra.mxu0 0.0
        %1027 = vmatprep.subr.mxu0 0.0
        %1028 = vmatpush1.msra.mxu0 0.0
        %1029 = vmatprep.subr.mxu0 0.0
        %1030 = vmatpush1.msra.mxu0 0.0
        %1031 = vmatprep.subr.mxu0 0.0
        %1032 = vmatpush1.msra.mxu0 0.0
        %1033 = vmatprep.subr.mxu0 0.0
        %1034 = vmatpush1.msra.mxu0 0.0
        %1035 = vmatprep.subr.mxu0 0.0
        %1036 = vmatpush1.msra.mxu0 0.0
        %1037 = vmatprep.subr.mxu0 0.0
        %1038 = vmatpush1.msra.mxu0 0.0
        %1039 = vmatprep.subr.mxu0 0.0
        %1040 = vmatpush1.msra.mxu0 0.0
        %1041 = vmatprep.subr.mxu0 0.0
        %1042 = vmatpush1.msra.mxu0 0.0
        %1043 = vmatprep.subr.mxu0 0.0
        %1044 = vmatpush1.msra.mxu0 0.0
        %1045 = vmatprep.subr.mxu0 0.0
        %1046 = vmatpush1.msra.mxu0 0.0
        %1047 = vmatprep.subr.mxu0 0.0
        %1048 = vmatpush1.msra.mxu0 0.0
        %1049 = vmatprep.subr.mxu0 0.0
        %1050 = vmatpush1.msra.mxu0 0.0
        %1051 = vmatprep.subr.mxu0 0.0
        %1052 = vmatpush1.msra.mxu0 0.0
        %1053 = vmatprep.subr.mxu0 0.0
        %1054 = vmatpush1.msra.mxu0 0.0
        %1055 = vmatprep.subr.mxu0 0.0
        %1056 = vmatpush1.msra.mxu0 0.0
        %1057 = vmatprep.subr.mxu0 0.0
        %1058 = vmatpush1.msra.mxu0 0.0
        %1059 = vmatprep.mubr.f32.mxu0 0.0
        %1060 = vmatmul.mubr.f32.gmra.mrb[0].mxu0 %v984
        %v1061 = vpop.f32.mrb[0].mxu0
        %v1062 = vadd.f32 %v966, %v1061
        %v1063 = vpop.f32.mrb[0].mxu0
        %v1064 = vadd.f32 %v966, %v1063
        %1065 = vmatprep.mubr.f32.mxu0 0.0
        %1066 = vmatmul.mubr.f32.gmra.mrb[0].mxu0 %v987
        %v1067 = vpop.f32.mrb[0].mxu0
        %v1068 = vadd.f32 %v971, %v1067
        %v1069 = vpop.f32.mrb[0].mxu0
        %v1070 = vadd.f32 %v971, %v1069
        %1071 = vmatprep.mubr.f32.mxu0 0.0
        %1072 = vmatmul.mubr.f32.gmra.mrb[0].mxu0 %v990
        %v1073 = vpop.f32.mrb[0].mxu0
        %v1074 = vadd.f32 %v976, %v1073
        %v1075 = vpop.f32.mrb[0].mxu0
        %v1076 = vadd.f32 %v976, %v1075
        %1077 = vmatprep.mubr.f32.mxu0 0.0
        %1078 = vmatmul.mubr.f32.gmra.mrb[0].mxu0 %v993
        %v1079 = vpop.f32.mrb[0].mxu0
        %v1080 = vadd.f32 %v981, %v1079
        %v1081 = vpop.f32.mrb[0].mxu0
        %v1082 = vadd.f32 %v981, %v1081
        %1083 = vdwg.mxu0
        %v1084 = vmax.f32 %v1062, 0.0
        %v1085 = vmax.f32 %v1064, 0.0
        %v1086 = vmax.f32 %v1068, 0.0
        %v1087 = vmax.f32 %v1070, 0.0
        %v1088 = vmax.f32 %v1074, 0.0
        %v1089 = vmax.f32 %v1076, 0.0
        %v1090 = vmax.f32 %v1080, 0.0
        %v1091 = vmax.f32 %v1082, 0.0
        %s1092 = scalar_lea.vmem %s4, 32
        %v1093 = vld [vmem:[%s1092] sm:$0xff]
        %v1094 = vld [vmem:[%s1092 + $0x8] sm:$0xff]
        %v1095 = vld [vmem:[%s1092 + $0x10] sm:$0xff]
        %v1096 = vld [vmem:[%s1092 + $0x18] sm:$0xff]
        %s1097 = scalar_lea.vmem %s5, 32
        %v1098 = vld [vmem:[%s1097] sm:$0xff]
        %v1099 = vld [vmem:[%s1097 + $0x8] sm:$0xff]
        %v1100 = vld [vmem:[%s1097 + $0x10] sm:$0xff]
        %v1101 = vld [vmem:[%s1097 + $0x18] sm:$0xff]
        %1103 = vset.pattern.permute.xlu0 0
        %1104 = vperm.xlu0 %1103, %v1098
        %v1105 = vpop.permute.xlu0 %1104
        %1108 = vset.pattern.permute.xlu0 0
        %1109 = vperm.xlu0 %1108, %v1099
        %v1110 = vpop.permute.xlu0 %1109
        %1113 = vset.pattern.permute.xlu0 0
        %1114 = vperm.xlu0 %1113, %v1100
        %v1115 = vpop.permute.xlu0 %1114
        %1118 = vset.pattern.permute.xlu0 0
        %1119 = vperm.xlu0 %1118, %v1101
        %v1120 = vpop.permute.xlu0 %1119
        %v1123 = vsel %vm627, %v1093, 0
        %v1126 = vsel %vm627, %v1094, 0
        %v1129 = vsel %vm627, %v1095, 0
        %v1132 = vsel %vm627, %v1096, 0
        %1134 = vmatprep.subr.mxu0 %v1085
        %1135 = vmatpush1.msra.mxu0 %v1084
        %1136 = vmatprep.subr.mxu0 %v1087
        %1137 = vmatpush1.msra.mxu0 %v1086
        %1138 = vmatprep.subr.mxu0 %v1089
        %1139 = vmatpush1.msra.mxu0 %v1088
        %1140 = vmatprep.subr.mxu0 %v1091
        %1141 = vmatpush1.msra.mxu0 %v1090
        %1142 = vmatprep.subr.mxu0 0.0
        %1143 = vmatpush1.msra.mxu0 0.0
        %1144 = vmatprep.subr.mxu0 0.0
        %1145 = vmatpush1.msra.mxu0 0.0
        %1146 = vmatprep.subr.mxu0 0.0
        %1147 = vmatpush1.msra.mxu0 0.0
        %1148 = vmatprep.subr.mxu0 0.0
        %1149 = vmatpush1.msra.mxu0 0.0
        %1150 = vmatprep.subr.mxu0 0.0
        %1151 = vmatpush1.msra.mxu0 0.0
        %1152 = vmatprep.subr.mxu0 0.0
        %1153 = vmatpush1.msra.mxu0 0.0
        %1154 = vmatprep.subr.mxu0 0.0
        %1155 = vmatpush1.msra.mxu0 0.0
        %1156 = vmatprep.subr.mxu0 0.0
        %1157 = vmatpush1.msra.mxu0 0.0
        %1158 = vmatprep.subr.mxu0 0.0
        %1159 = vmatpush1.msra.mxu0 0.0
        %1160 = vmatprep.subr.mxu0 0.0
        %1161 = vmatpush1.msra.mxu0 0.0
        %1162 = vmatprep.subr.mxu0 0.0
        %1163 = vmatpush1.msra.mxu0 0.0
        %1164 = vmatprep.subr.mxu0 0.0
        %1165 = vmatpush1.msra.mxu0 0.0
        %1166 = vmatprep.subr.mxu0 0.0
        %1167 = vmatpush1.msra.mxu0 0.0
        %1168 = vmatprep.subr.mxu0 0.0
        %1169 = vmatpush1.msra.mxu0 0.0
        %1170 = vmatprep.subr.mxu0 0.0
        %1171 = vmatpush1.msra.mxu0 0.0
        %1172 = vmatprep.subr.mxu0 0.0
        %1173 = vmatpush1.msra.mxu0 0.0
        %1174 = vmatprep.subr.mxu0 0.0
        %1175 = vmatpush1.msra.mxu0 0.0
        %1176 = vmatprep.subr.mxu0 0.0
        %1177 = vmatpush1.msra.mxu0 0.0
        %1178 = vmatprep.subr.mxu0 0.0
        %1179 = vmatpush1.msra.mxu0 0.0
        %1180 = vmatprep.subr.mxu0 0.0
        %1181 = vmatpush1.msra.mxu0 0.0
        %1182 = vmatprep.subr.mxu0 0.0
        %1183 = vmatpush1.msra.mxu0 0.0
        %1184 = vmatprep.subr.mxu0 0.0
        %1185 = vmatpush1.msra.mxu0 0.0
        %1186 = vmatprep.subr.mxu0 0.0
        %1187 = vmatpush1.msra.mxu0 0.0
        %1188 = vmatprep.subr.mxu0 0.0
        %1189 = vmatpush1.msra.mxu0 0.0
        %1190 = vmatprep.subr.mxu0 0.0
        %1191 = vmatpush1.msra.mxu0 0.0
        %1192 = vmatprep.subr.mxu0 0.0
        %1193 = vmatpush1.msra.mxu0 0.0
        %1194 = vmatprep.subr.mxu0 0.0
        %1195 = vmatpush1.msra.mxu0 0.0
        %1196 = vmatprep.subr.mxu0 0.0
        %1197 = vmatpush1.msra.mxu0 0.0
        %1198 = vmatprep.mubr.f32.mxu0 0.0
        %1199 = vmatmul.mubr.f32.gmra.mrb[0].mxu0 %v1123
        %v1200 = vpop.f32.mrb[0].mxu0
        %v1201 = vadd.f32 %v1105, %v1200
        %v1202 = vpop.f32.mrb[0].mxu0
        %v1203 = vadd.f32 %v1105, %v1202
        %1204 = vmatprep.mubr.f32.mxu0 0.0
        %1205 = vmatmul.mubr.f32.gmra.mrb[0].mxu0 %v1126
        %v1206 = vpop.f32.mrb[0].mxu0
        %v1207 = vadd.f32 %v1110, %v1206
        %v1208 = vpop.f32.mrb[0].mxu0
        %v1209 = vadd.f32 %v1110, %v1208
        %1210 = vmatprep.mubr.f32.mxu0 0.0
        %1211 = vmatmul.mubr.f32.gmra.mrb[0].mxu0 %v1129
        %v1212 = vpop.f32.mrb[0].mxu0
        %v1213 = vadd.f32 %v1115, %v1212
        %v1214 = vpop.f32.mrb[0].mxu0
        %v1215 = vadd.f32 %v1115, %v1214
        %1216 = vmatprep.mubr.f32.mxu0 0.0
        %1217 = vmatmul.mubr.f32.gmra.mrb[0].mxu0 %v1132
        %v1218 = vpop.f32.mrb[0].mxu0
        %v1219 = vadd.f32 %v1120, %v1218
        %v1220 = vpop.f32.mrb[0].mxu0
        %v1221 = vadd.f32 %v1120, %v1220
        %1222 = vdwg.mxu0
        %v1223 = vmax.f32 %v1201, 0.0
        %v1224 = vmax.f32 %v1203, 0.0
        %v1225 = vmax.f32 %v1207, 0.0
        %v1226 = vmax.f32 %v1209, 0.0
        %v1227 = vmax.f32 %v1213, 0.0
        %v1228 = vmax.f32 %v1215, 0.0
        %v1229 = vmax.f32 %v1219, 0.0
        %v1230 = vmax.f32 %v1221, 0.0
        %s1231 = scalar_lea.vmem %s6, 8
        %v1232 = vld [vmem:[%s1231] sm:$0xff]
        %s1233 = scalar_lea.vmem %s7, 8
        %v1234 = vld [vmem:[%s1233] sm:$0xff]
        %1236 = vset.pattern.permute.xlu0 0
        %1237 = vperm.xlu0 %1236, %v1234
        %v1238 = vpop.permute.xlu0 %1237
        %v1241 = vsel %vm627, %v1232, 0
        %1243 = vmatprep.subr.mxu0 %v1224
        %1244 = vmatpush1.msra.mxu0 %v1223
        %1245 = vmatprep.subr.mxu0 %v1226
        %1246 = vmatpush1.msra.mxu0 %v1225
        %1247 = vmatprep.subr.mxu0 %v1228
        %1248 = vmatpush1.msra.mxu0 %v1227
        %1249 = vmatprep.subr.mxu0 %v1230
        %1250 = vmatpush1.msra.mxu0 %v1229
        %1251 = vmatprep.subr.mxu0 0.0
        %1252 = vmatpush1.msra.mxu0 0.0
        %1253 = vmatprep.subr.mxu0 0.0
        %1254 = vmatpush1.msra.mxu0 0.0
        %1255 = vmatprep.subr.mxu0 0.0
        %1256 = vmatpush1.msra.mxu0 0.0
        %1257 = vmatprep.subr.mxu0 0.0
        %1258 = vmatpush1.msra.mxu0 0.0
        %1259 = vmatprep.subr.mxu0 0.0
        %1260 = vmatpush1.msra.mxu0 0.0
        %1261 = vmatprep.subr.mxu0 0.0
        %1262 = vmatpush1.msra.mxu0 0.0
        %1263 = vmatprep.subr.mxu0 0.0
        %1264 = vmatpush1.msra.mxu0 0.0
        %1265 = vmatprep.subr.mxu0 0.0
        %1266 = vmatpush1.msra.mxu0 0.0
        %1267 = vmatprep.subr.mxu0 0.0
        %1268 = vmatpush1.msra.mxu0 0.0
        %1269 = vmatprep.subr.mxu0 0.0
        %1270 = vmatpush1.msra.mxu0 0.0
        %1271 = vmatprep.subr.mxu0 0.0
        %1272 = vmatpush1.msra.mxu0 0.0
        %1273 = vmatprep.subr.mxu0 0.0
        %1274 = vmatpush1.msra.mxu0 0.0
        %1275 = vmatprep.subr.mxu0 0.0
        %1276 = vmatpush1.msra.mxu0 0.0
        %1277 = vmatprep.subr.mxu0 0.0
        %1278 = vmatpush1.msra.mxu0 0.0
        %1279 = vmatprep.subr.mxu0 0.0
        %1280 = vmatpush1.msra.mxu0 0.0
        %1281 = vmatprep.subr.mxu0 0.0
        %1282 = vmatpush1.msra.mxu0 0.0
        %1283 = vmatprep.subr.mxu0 0.0
        %1284 = vmatpush1.msra.mxu0 0.0
        %1285 = vmatprep.subr.mxu0 0.0
        %1286 = vmatpush1.msra.mxu0 0.0
        %1287 = vmatprep.subr.mxu0 0.0
        %1288 = vmatpush1.msra.mxu0 0.0
        %1289 = vmatprep.subr.mxu0 0.0
        %1290 = vmatpush1.msra.mxu0 0.0
        %1291 = vmatprep.subr.mxu0 0.0
        %1292 = vmatpush1.msra.mxu0 0.0
        %1293 = vmatprep.subr.mxu0 0.0
        %1294 = vmatpush1.msra.mxu0 0.0
        %1295 = vmatprep.subr.mxu0 0.0
        %1296 = vmatpush1.msra.mxu0 0.0
        %1297 = vmatprep.subr.mxu0 0.0
        %1298 = vmatpush1.msra.mxu0 0.0
        %1299 = vmatprep.subr.mxu0 0.0
        %1300 = vmatpush1.msra.mxu0 0.0
        %1301 = vmatprep.subr.mxu0 0.0
        %1302 = vmatpush1.msra.mxu0 0.0
        %1303 = vmatprep.subr.mxu0 0.0
        %1304 = vmatpush1.msra.mxu0 0.0
        %1305 = vmatprep.subr.mxu0 0.0
        %1306 = vmatpush1.msra.mxu0 0.0
        %1307 = vmatprep.mubr.f32.mxu0 0.0
        %1308 = vmatmul.mubr.f32.gmra.mrb[0].mxu0 %v1241
        %v1309 = vpop.f32.mrb[0].mxu0
        %v1310 = vadd.f32 %v1238, %v1309
        %v1311 = vpop.f32.mrb[0].mxu0
        %v1312 = vadd.f32 %v1238, %v1311
        %1313 = vdwg.mxu0
        %s1314 = scalar_lea.vmem %s8, 8
        %v1315 = vld [vmem:[%s1314] sm:$0xff]
        %s1316 = scalar_lea.vmem %s9, 8
        %v1317 = vld [vmem:[%s1316] sm:$0xff]
        %1319 = vset.pattern.permute.xlu0 0
        %1320 = vperm.xlu0 %1319, %v1317
        %v1321 = vpop.permute.xlu0 %1320
        %v1324 = vsel %vm627, %v1315, 0
        %1326 = vmatprep.subr.mxu0 %v1224
        %1327 = vmatpush1.msra.mxu0 %v1223
        %1328 = vmatprep.subr.mxu0 %v1226
        %1329 = vmatpush1.msra.mxu0 %v1225
        %1330 = vmatprep.subr.mxu0 %v1228
        %1331 = vmatpush1.msra.mxu0 %v1227
        %1332 = vmatprep.subr.mxu0 %v1230
        %1333 = vmatpush1.msra.mxu0 %v1229
        %1334 = vmatprep.subr.mxu0 0.0
        %1335 = vmatpush1.msra.mxu0 0.0
        %1336 = vmatprep.subr.mxu0 0.0
        %1337 = vmatpush1.msra.mxu0 0.0
        %1338 = vmatprep.subr.mxu0 0.0
        %1339 = vmatpush1.msra.mxu0 0.0
        %1340 = vmatprep.subr.mxu0 0.0
        %1341 = vmatpush1.msra.mxu0 0.0
        %1342 = vmatprep.subr.mxu0 0.0
        %1343 = vmatpush1.msra.mxu0 0.0
        %1344 = vmatprep.subr.mxu0 0.0
        %1345 = vmatpush1.msra.mxu0 0.0
        %1346 = vmatprep.subr.mxu0 0.0
        %1347 = vmatpush1.msra.mxu0 0.0
        %1348 = vmatprep.subr.mxu0 0.0
        %1349 = vmatpush1.msra.mxu0 0.0
        %1350 = vmatprep.subr.mxu0 0.0
        %1351 = vmatpush1.msra.mxu0 0.0
        %1352 = vmatprep.subr.mxu0 0.0
        %1353 = vmatpush1.msra.mxu0 0.0
        %1354 = vmatprep.subr.mxu0 0.0
        %1355 = vmatpush1.msra.mxu0 0.0
        %1356 = vmatprep.subr.mxu0 0.0
        %1357 = vmatpush1.msra.mxu0 0.0
        %1358 = vmatprep.subr.mxu0 0.0
        %1359 = vmatpush1.msra.mxu0 0.0
        %1360 = vmatprep.subr.mxu0 0.0
        %1361 = vmatpush1.msra.mxu0 0.0
        %1362 = vmatprep.subr.mxu0 0.0
        %1363 = vmatpush1.msra.mxu0 0.0
        %1364 = vmatprep.subr.mxu0 0.0
        %1365 = vmatpush1.msra.mxu0 0.0
        %1366 = vmatprep.subr.mxu0 0.0
        %1367 = vmatpush1.msra.mxu0 0.0
        %1368 = vmatprep.subr.mxu0 0.0
        %1369 = vmatpush1.msra.mxu0 0.0
        %1370 = vmatprep.subr.mxu0 0.0
        %1371 = vmatpush1.msra.mxu0 0.0
        %1372 = vmatprep.subr.mxu0 0.0
        %1373 = vmatpush1.msra.mxu0 0.0
        %1374 = vmatprep.subr.mxu0 0.0
        %1375 = vmatpush1.msra.mxu0 0.0
        %1376 = vmatprep.subr.mxu0 0.0
        %1377 = vmatpush1.msra.mxu0 0.0
        %1378 = vmatprep.subr.mxu0 0.0
        %1379 = vmatpush1.msra.mxu0 0.0
        %1380 = vmatprep.subr.mxu0 0.0
        %1381 = vmatpush1.msra.mxu0 0.0
        %1382 = vmatprep.subr.mxu0 0.0
        %1383 = vmatpush1.msra.mxu0 0.0
        %1384 = vmatprep.subr.mxu0 0.0
        %1385 = vmatpush1.msra.mxu0 0.0
        %1386 = vmatprep.subr.mxu0 0.0
        %1387 = vmatpush1.msra.mxu0 0.0
        %1388 = vmatprep.subr.mxu0 0.0
        %1389 = vmatpush1.msra.mxu0 0.0
        %1390 = vmatprep.mubr.f32.mxu0 0.0
        %1391 = vmatmul.mubr.f32.gmra.mrb[0].mxu0 %v1324
        %v1392 = vpop.f32.mrb[0].mxu0
        %v1393 = vadd.f32 %v1321, %v1392
        %v1394 = vpop.f32.mrb[0].mxu0
        %v1395 = vadd.f32 %v1321, %v1394
        %1396 = vdwg.mxu0
        %v1397 = vadd.f32 %v1393, 2.0
        %v1398 = vadd.f32 %v1395, 2.0
        %v1399 = vmin.f32 %v1397, 0.0
        %v1400 = vmin.f32 %v1398, 0.0
        %v1401 = vand.u32 2147483647, %v1397
        %v1402 = vand.u32 2147483647, %v1398
        %v1403 = vsub.f32 0.0, %v1401
        %v1404 = vsub.f32 0.0, %v1402
        %v1405 = vmul.f32 %v1403, 1.442695
        %v1406 = vpow.pop %v1405
        %v1407 = vmul.f32 %v1404, 1.442695
        %v1408 = vpow.pop %v1407
        %v1409 = vadd.f32 %v1406, 1.0
        %v1410 = vlog2.pop %v1409
        %v1411 = vmul.f32 %v1410, 0.6931472
        %v1412 = vmul.f32 -0.5, %v1406
        %v1413 = vadd.f32 %v1412, 1.0
        %v1414 = vmul.f32 %v1413, %v1406
        %v1415 = vand.u32 2147483647, %v1406
        %vm1416 = vcmp.lt.f32.partialorder %v1415, 0.0004427343
        %v1417 = vsel %vm1416, %v1414, %v1411
        %v1418 = vadd.f32 %v1408, 1.0
        %v1419 = vlog2.pop %v1418
        %v1420 = vmul.f32 %v1419, 0.6931472
        %v1421 = vmul.f32 -0.5, %v1408
        %v1422 = vadd.f32 %v1421, 1.0
        %v1423 = vmul.f32 %v1422, %v1408
        %v1424 = vand.u32 2147483647, %v1408
        %vm1425 = vcmp.lt.f32.partialorder %v1424, 0.0004427343
        %v1426 = vsel %vm1425, %v1423, %v1420
        %v1427 = vsub.f32 %v1399, %v1417
        %v1428 = vsub.f32 %v1400, %v1426
        %v1429 = vmul.f32 %v1427, 1.442695
        %v1430 = vpow.pop %v1429
        %v1431 = vmul.f32 %v1428, 1.442695
        %v1432 = vpow.pop %v1431
        %v1433 = vmul.f32 %v937, %v1430
        %v1434 = vmul.f32 %v938, %v1432
        %v1435 = vadd.f32 %v1433, %v1310
        %v1436 = vadd.f32 %v1434, %v1312
        %v1437 = vrot.slane %v1427, 4
        %v1438 = vadd.f32 %v1427, %v1437
        %v1439 = vrot.slane %v1438, 2
        %v1440 = vadd.f32 %v1438, %v1439
        %v1441 = vrot.slane %v1440, 1
        %v1442 = vadd.f32 %v1440, %v1441
        %v1443 = vrot.slane %v1428, 4
        %v1444 = vadd.f32 %v1428, %v1443
        %v1445 = vrot.slane %v1444, 2
        %v1446 = vadd.f32 %v1444, %v1445
        %v1447 = vrot.slane %v1446, 1
        %v1448 = vadd.f32 %v1446, %v1447
        %v1449 = vadd.f32 %v951, %v1442
        %v1450 = vadd.f32 %v952, %v1448
        %s1451 = scalar_lea.vmem %s2, 64
        %v1452 = vld [vmem:[%s1451] sm:$0xff]
        %v1453 = vld [vmem:[%s1451 + $0x8] sm:$0xff]
        %v1454 = vld [vmem:[%s1451 + $0x10] sm:$0xff]
        %v1455 = vld [vmem:[%s1451 + $0x18] sm:$0xff]
        %s1456 = scalar_lea.vmem %s3, 64
        %v1457 = vld [vmem:[%s1456] sm:$0xff]
        %v1458 = vld [vmem:[%s1456 + $0x8] sm:$0xff]
        %v1459 = vld [vmem:[%s1456 + $0x10] sm:$0xff]
        %v1460 = vld [vmem:[%s1456 + $0x18] sm:$0xff]
        %1462 = vset.pattern.permute.xlu0 0
        %1463 = vperm.xlu0 %1462, %v1457
        %v1464 = vpop.permute.xlu0 %1463
        %1467 = vset.pattern.permute.xlu0 0
        %1468 = vperm.xlu0 %1467, %v1458
        %v1469 = vpop.permute.xlu0 %1468
        %1472 = vset.pattern.permute.xlu0 0
        %1473 = vperm.xlu0 %1472, %v1459
        %v1474 = vpop.permute.xlu0 %1473
        %1477 = vset.pattern.permute.xlu0 0
        %1478 = vperm.xlu0 %1477, %v1460
        %v1479 = vpop.permute.xlu0 %1478
        %v1482 = vsel %vm489, %v1452, 0
        %v1485 = vsel %vm489, %v1453, 0
        %v1488 = vsel %vm489, %v1454, 0
        %v1491 = vsel %vm489, %v1455, 0
        %1493 = vmatprep.subr.mxu0 %v458
        %1494 = vmatpush1.msra.mxu0 %v457
        %1495 = vmatprep.subr.mxu0 0.0
        %1496 = vmatpush1.msra.mxu0 0.0
        %1497 = vmatprep.subr.mxu0 0.0
        %1498 = vmatpush1.msra.mxu0 0.0
        %1499 = vmatprep.subr.mxu0 0.0
        %1500 = vmatpush1.msra.mxu0 0.0
        %1501 = vmatprep.subr.mxu0 0.0
        %1502 = vmatpush1.msra.mxu0 0.0
        %1503 = vmatprep.subr.mxu0 0.0
        %1504 = vmatpush1.msra.mxu0 0.0
        %1505 = vmatprep.subr.mxu0 0.0
        %1506 = vmatpush1.msra.mxu0 0.0
        %1507 = vmatprep.subr.mxu0 0.0
        %1508 = vmatpush1.msra.mxu0 0.0
        %1509 = vmatprep.subr.mxu0 0.0
        %1510 = vmatpush1.msra.mxu0 0.0
        %1511 = vmatprep.subr.mxu0 0.0
        %1512 = vmatpush1.msra.mxu0 0.0
        %1513 = vmatprep.subr.mxu0 0.0
        %1514 = vmatpush1.msra.mxu0 0.0
        %1515 = vmatprep.subr.mxu0 0.0
        %1516 = vmatpush1.msra.mxu0 0.0
        %1517 = vmatprep.subr.mxu0 0.0
        %1518 = vmatpush1.msra.mxu0 0.0
        %1519 = vmatprep.subr.mxu0 0.0
        %1520 = vmatpush1.msra.mxu0 0.0
        %1521 = vmatprep.subr.mxu0 0.0
        %1522 = vmatpush1.msra.mxu0 0.0
        %1523 = vmatprep.subr.mxu0 0.0
        %1524 = vmatpush1.msra.mxu0 0.0
        %1525 = vmatprep.subr.mxu0 0.0
        %1526 = vmatpush1.msra.mxu0 0.0
        %1527 = vmatprep.subr.mxu0 0.0
        %1528 = vmatpush1.msra.mxu0 0.0
        %1529 = vmatprep.subr.mxu0 0.0
        %1530 = vmatpush1.msra.mxu0 0.0
        %1531 = vmatprep.subr.mxu0 0.0
        %1532 = vmatpush1.msra.mxu0 0.0
        %1533 = vmatprep.subr.mxu0 0.0
        %1534 = vmatpush1.msra.mxu0 0.0
        %1535 = vmatprep.subr.mxu0 0.0
        %1536 = vmatpush1.msra.mxu0 0.0
        %1537 = vmatprep.subr.mxu0 0.0
        %1538 = vmatpush1.msra.mxu0 0.0
        %1539 = vmatprep.subr.mxu0 0.0
        %1540 = vmatpush1.msra.mxu0 0.0
        %1541 = vmatprep.subr.mxu0 0.0
        %1542 = vmatpush1.msra.mxu0 0.0
        %1543 = vmatprep.subr.mxu0 0.0
        %1544 = vmatpush1.msra.mxu0 0.0
        %1545 = vmatprep.subr.mxu0 0.0
        %1546 = vmatpush1.msra.mxu0 0.0
        %1547 = vmatprep.subr.mxu0 0.0
        %1548 = vmatpush1.msra.mxu0 0.0
        %1549 = vmatprep.subr.mxu0 0.0
        %1550 = vmatpush1.msra.mxu0 0.0
        %1551 = vmatprep.subr.mxu0 0.0
        %1552 = vmatpush1.msra.mxu0 0.0
        %1553 = vmatprep.subr.mxu0 0.0
        %1554 = vmatpush1.msra.mxu0 0.0
        %1555 = vmatprep.subr.mxu0 0.0
        %1556 = vmatpush1.msra.mxu0 0.0
        %1557 = vmatprep.mubr.f32.mxu0 0.0
        %1558 = vmatmul.mubr.f32.gmra.mrb[0].mxu0 %v1482
        %v1559 = vpop.f32.mrb[0].mxu0
        %v1560 = vadd.f32 %v1464, %v1559
        %v1561 = vpop.f32.mrb[0].mxu0
        %v1562 = vadd.f32 %v1464, %v1561
        %1563 = vmatprep.mubr.f32.mxu0 0.0
        %1564 = vmatmul.mubr.f32.gmra.mrb[0].mxu0 %v1485
        %v1565 = vpop.f32.mrb[0].mxu0
        %v1566 = vadd.f32 %v1469, %v1565
        %v1567 = vpop.f32.mrb[0].mxu0
        %v1568 = vadd.f32 %v1469, %v1567
        %1569 = vmatprep.mubr.f32.mxu0 0.0
        %1570 = vmatmul.mubr.f32.gmra.mrb[0].mxu0 %v1488
        %v1571 = vpop.f32.mrb[0].mxu0
        %v1572 = vadd.f32 %v1474, %v1571
        %v1573 = vpop.f32.mrb[0].mxu0
        %v1574 = vadd.f32 %v1474, %v1573
        %1575 = vmatprep.mubr.f32.mxu0 0.0
        %1576 = vmatmul.mubr.f32.gmra.mrb[0].mxu0 %v1491
        %v1577 = vpop.f32.mrb[0].mxu0
        %v1578 = vadd.f32 %v1479, %v1577
        %v1579 = vpop.f32.mrb[0].mxu0
        %v1580 = vadd.f32 %v1479, %v1579
        %1581 = vdwg.mxu0
        %v1582 = vmax.f32 %v1560, 0.0
        %v1583 = vmax.f32 %v1562, 0.0
        %v1584 = vmax.f32 %v1566, 0.0
        %v1585 = vmax.f32 %v1568, 0.0
        %v1586 = vmax.f32 %v1572, 0.0
        %v1587 = vmax.f32 %v1574, 0.0
        %v1588 = vmax.f32 %v1578, 0.0
        %v1589 = vmax.f32 %v1580, 0.0
        %s1590 = scalar_lea.vmem %s4, 64
        %v1591 = vld [vmem:[%s1590] sm:$0xff]
        %v1592 = vld [vmem:[%s1590 + $0x8] sm:$0xff]
        %v1593 = vld [vmem:[%s1590 + $0x10] sm:$0xff]
        %v1594 = vld [vmem:[%s1590 + $0x18] sm:$0xff]
        %s1595 = scalar_lea.vmem %s5, 64
        %v1596 = vld [vmem:[%s1595] sm:$0xff]
        %v1597 = vld [vmem:[%s1595 + $0x8] sm:$0xff]
        %v1598 = vld [vmem:[%s1595 + $0x10] sm:$0xff]
        %v1599 = vld [vmem:[%s1595 + $0x18] sm:$0xff]
        %1601 = vset.pattern.permute.xlu0 0
        %1602 = vperm.xlu0 %1601, %v1596
        %v1603 = vpop.permute.xlu0 %1602
        %1606 = vset.pattern.permute.xlu0 0
        %1607 = vperm.xlu0 %1606, %v1597
        %v1608 = vpop.permute.xlu0 %1607
        %1611 = vset.pattern.permute.xlu0 0
        %1612 = vperm.xlu0 %1611, %v1598
        %v1613 = vpop.permute.xlu0 %1612
        %1616 = vset.pattern.permute.xlu0 0
        %1617 = vperm.xlu0 %1616, %v1599
        %v1618 = vpop.permute.xlu0 %1617
        %v1621 = vsel %vm627, %v1591, 0
        %v1624 = vsel %vm627, %v1592, 0
        %v1627 = vsel %vm627, %v1593, 0
        %v1630 = vsel %vm627, %v1594, 0
        %1632 = vmatprep.subr.mxu0 %v1583
        %1633 = vmatpush1.msra.mxu0 %v1582
        %1634 = vmatprep.subr.mxu0 %v1585
        %1635 = vmatpush1.msra.mxu0 %v1584
        %1636 = vmatprep.subr.mxu0 %v1587
        %1637 = vmatpush1.msra.mxu0 %v1586
        %1638 = vmatprep.subr.mxu0 %v1589
        %1639 = vmatpush1.msra.mxu0 %v1588
        %1640 = vmatprep.subr.mxu0 0.0
        %1641 = vmatpush1.msra.mxu0 0.0
        %1642 = vmatprep.subr.mxu0 0.0
        %1643 = vmatpush1.msra.mxu0 0.0
        %1644 = vmatprep.subr.mxu0 0.0
        %1645 = vmatpush1.msra.mxu0 0.0
        %1646 = vmatprep.subr.mxu0 0.0
        %1647 = vmatpush1.msra.mxu0 0.0
        %1648 = vmatprep.subr.mxu0 0.0
        %1649 = vmatpush1.msra.mxu0 0.0
        %1650 = vmatprep.subr.mxu0 0.0
        %1651 = vmatpush1.msra.mxu0 0.0
        %1652 = vmatprep.subr.mxu0 0.0
        %1653 = vmatpush1.msra.mxu0 0.0
        %1654 = vmatprep.subr.mxu0 0.0
        %1655 = vmatpush1.msra.mxu0 0.0
        %1656 = vmatprep.subr.mxu0 0.0
        %1657 = vmatpush1.msra.mxu0 0.0
        %1658 = vmatprep.subr.mxu0 0.0
        %1659 = vmatpush1.msra.mxu0 0.0
        %1660 = vmatprep.subr.mxu0 0.0
        %1661 = vmatpush1.msra.mxu0 0.0
        %1662 = vmatprep.subr.mxu0 0.0
        %1663 = vmatpush1.msra.mxu0 0.0
        %1664 = vmatprep.subr.mxu0 0.0
        %1665 = vmatpush1.msra.mxu0 0.0
        %1666 = vmatprep.subr.mxu0 0.0
        %1667 = vmatpush1.msra.mxu0 0.0
        %1668 = vmatprep.subr.mxu0 0.0
        %1669 = vmatpush1.msra.mxu0 0.0
        %1670 = vmatprep.subr.mxu0 0.0
        %1671 = vmatpush1.msra.mxu0 0.0
        %1672 = vmatprep.subr.mxu0 0.0
        %1673 = vmatpush1.msra.mxu0 0.0
        %1674 = vmatprep.subr.mxu0 0.0
        %1675 = vmatpush1.msra.mxu0 0.0
        %1676 = vmatprep.subr.mxu0 0.0
        %1677 = vmatpush1.msra.mxu0 0.0
        %1678 = vmatprep.subr.mxu0 0.0
        %1679 = vmatpush1.msra.mxu0 0.0
        %1680 = vmatprep.subr.mxu0 0.0
        %1681 = vmatpush1.msra.mxu0 0.0
        %1682 = vmatprep.subr.mxu0 0.0
        %1683 = vmatpush1.msra.mxu0 0.0
        %1684 = vmatprep.subr.mxu0 0.0
        %1685 = vmatpush1.msra.mxu0 0.0
        %1686 = vmatprep.subr.mxu0 0.0
        %1687 = vmatpush1.msra.mxu0 0.0
        %1688 = vmatprep.subr.mxu0 0.0
        %1689 = vmatpush1.msra.mxu0 0.0
        %1690 = vmatprep.subr.mxu0 0.0
        %1691 = vmatpush1.msra.mxu0 0.0
        %1692 = vmatprep.subr.mxu0 0.0
        %1693 = vmatpush1.msra.mxu0 0.0
        %1694 = vmatprep.subr.mxu0 0.0
        %1695 = vmatpush1.msra.mxu0 0.0
        %1696 = vmatprep.mubr.f32.mxu0 0.0
        %1697 = vmatmul.mubr.f32.gmra.mrb[0].mxu0 %v1621
        %v1698 = vpop.f32.mrb[0].mxu0
        %v1699 = vadd.f32 %v1603, %v1698
        %v1700 = vpop.f32.mrb[0].mxu0
        %v1701 = vadd.f32 %v1603, %v1700
        %1702 = vmatprep.mubr.f32.mxu0 0.0
        %1703 = vmatmul.mubr.f32.gmra.mrb[0].mxu0 %v1624
        %v1704 = vpop.f32.mrb[0].mxu0
        %v1705 = vadd.f32 %v1608, %v1704
        %v1706 = vpop.f32.mrb[0].mxu0
        %v1707 = vadd.f32 %v1608, %v1706
        %1708 = vmatprep.mubr.f32.mxu0 0.0
        %1709 = vmatmul.mubr.f32.gmra.mrb[0].mxu0 %v1627
        %v1710 = vpop.f32.mrb[0].mxu0
        %v1711 = vadd.f32 %v1613, %v1710
        %v1712 = vpop.f32.mrb[0].mxu0
        %v1713 = vadd.f32 %v1613, %v1712
        %1714 = vmatprep.mubr.f32.mxu0 0.0
        %1715 = vmatmul.mubr.f32.gmra.mrb[0].mxu0 %v1630
        %v1716 = vpop.f32.mrb[0].mxu0
        %v1717 = vadd.f32 %v1618, %v1716
        %v1718 = vpop.f32.mrb[0].mxu0
        %v1719 = vadd.f32 %v1618, %v1718
        %1720 = vdwg.mxu0
        %v1721 = vmax.f32 %v1699, 0.0
        %v1722 = vmax.f32 %v1701, 0.0
        %v1723 = vmax.f32 %v1705, 0.0
        %v1724 = vmax.f32 %v1707, 0.0
        %v1725 = vmax.f32 %v1711, 0.0
        %v1726 = vmax.f32 %v1713, 0.0
        %v1727 = vmax.f32 %v1717, 0.0
        %v1728 = vmax.f32 %v1719, 0.0
        %s1729 = scalar_lea.vmem %s6, 16
        %v1730 = vld [vmem:[%s1729] sm:$0xff]
        %s1731 = scalar_lea.vmem %s7, 16
        %v1732 = vld [vmem:[%s1731] sm:$0xff]
        %1734 = vset.pattern.permute.xlu0 0
        %1735 = vperm.xlu0 %1734, %v1732
        %v1736 = vpop.permute.xlu0 %1735
        %v1739 = vsel %vm627, %v1730, 0
        %1741 = vmatprep.subr.mxu0 %v1722
        %1742 = vmatpush1.msra.mxu0 %v1721
        %1743 = vmatprep.subr.mxu0 %v1724
        %1744 = vmatpush1.msra.mxu0 %v1723
        %1745 = vmatprep.subr.mxu0 %v1726
        %1746 = vmatpush1.msra.mxu0 %v1725
        %1747 = vmatprep.subr.mxu0 %v1728
        %1748 = vmatpush1.msra.mxu0 %v1727
        %1749 = vmatprep.subr.mxu0 0.0
        %1750 = vmatpush1.msra.mxu0 0.0
        %1751 = vmatprep.subr.mxu0 0.0
        %1752 = vmatpush1.msra.mxu0 0.0
        %1753 = vmatprep.subr.mxu0 0.0
        %1754 = vmatpush1.msra.mxu0 0.0
        %1755 = vmatprep.subr.mxu0 0.0
        %1756 = vmatpush1.msra.mxu0 0.0
        %1757 = vmatprep.subr.mxu0 0.0
        %1758 = vmatpush1.msra.mxu0 0.0
        %1759 = vmatprep.subr.mxu0 0.0
        %1760 = vmatpush1.msra.mxu0 0.0
        %1761 = vmatprep.subr.mxu0 0.0
        %1762 = vmatpush1.msra.mxu0 0.0
        %1763 = vmatprep.subr.mxu0 0.0
        %1764 = vmatpush1.msra.mxu0 0.0
        %1765 = vmatprep.subr.mxu0 0.0
        %1766 = vmatpush1.msra.mxu0 0.0
        %1767 = vmatprep.subr.mxu0 0.0
        %1768 = vmatpush1.msra.mxu0 0.0
        %1769 = vmatprep.subr.mxu0 0.0
        %1770 = vmatpush1.msra.mxu0 0.0
        %1771 = vmatprep.subr.mxu0 0.0
        %1772 = vmatpush1.msra.mxu0 0.0
        %1773 = vmatprep.subr.mxu0 0.0
        %1774 = vmatpush1.msra.mxu0 0.0
        %1775 = vmatprep.subr.mxu0 0.0
        %1776 = vmatpush1.msra.mxu0 0.0
        %1777 = vmatprep.subr.mxu0 0.0
        %1778 = vmatpush1.msra.mxu0 0.0
        %1779 = vmatprep.subr.mxu0 0.0
        %1780 = vmatpush1.msra.mxu0 0.0
        %1781 = vmatprep.subr.mxu0 0.0
        %1782 = vmatpush1.msra.mxu0 0.0
        %1783 = vmatprep.subr.mxu0 0.0
        %1784 = vmatpush1.msra.mxu0 0.0
        %1785 = vmatprep.subr.mxu0 0.0
        %1786 = vmatpush1.msra.mxu0 0.0
        %1787 = vmatprep.subr.mxu0 0.0
        %1788 = vmatpush1.msra.mxu0 0.0
        %1789 = vmatprep.subr.mxu0 0.0
        %1790 = vmatpush1.msra.mxu0 0.0
        %1791 = vmatprep.subr.mxu0 0.0
        %1792 = vmatpush1.msra.mxu0 0.0
        %1793 = vmatprep.subr.mxu0 0.0
        %1794 = vmatpush1.msra.mxu0 0.0
        %1795 = vmatprep.subr.mxu0 0.0
        %1796 = vmatpush1.msra.mxu0 0.0
        %1797 = vmatprep.subr.mxu0 0.0
        %1798 = vmatpush1.msra.mxu0 0.0
        %1799 = vmatprep.subr.mxu0 0.0
        %1800 = vmatpush1.msra.mxu0 0.0
        %1801 = vmatprep.subr.mxu0 0.0
        %1802 = vmatpush1.msra.mxu0 0.0
        %1803 = vmatprep.subr.mxu0 0.0
        %1804 = vmatpush1.msra.mxu0 0.0
        %1805 = vmatprep.mubr.f32.mxu0 0.0
        %1806 = vmatmul.mubr.f32.gmra.mrb[0].mxu0 %v1739
        %v1807 = vpop.f32.mrb[0].mxu0
        %v1808 = vadd.f32 %v1736, %v1807
        %v1809 = vpop.f32.mrb[0].mxu0
        %v1810 = vadd.f32 %v1736, %v1809
        %1811 = vdwg.mxu0
        %s1812 = scalar_lea.vmem %s8, 16
        %v1813 = vld [vmem:[%s1812] sm:$0xff]
        %s1814 = scalar_lea.vmem %s9, 16
        %v1815 = vld [vmem:[%s1814] sm:$0xff]
        %1817 = vset.pattern.permute.xlu0 0
        %1818 = vperm.xlu0 %1817, %v1815
        %v1819 = vpop.permute.xlu0 %1818
        %v1822 = vsel %vm627, %v1813, 0
        %1824 = vmatprep.subr.mxu0 %v1722
        %1825 = vmatpush1.msra.mxu0 %v1721
        %1826 = vmatprep.subr.mxu0 %v1724
        %1827 = vmatpush1.msra.mxu0 %v1723
        %1828 = vmatprep.subr.mxu0 %v1726
        %1829 = vmatpush1.msra.mxu0 %v1725
        %1830 = vmatprep.subr.mxu0 %v1728
        %1831 = vmatpush1.msra.mxu0 %v1727
        %1832 = vmatprep.subr.mxu0 0.0
        %1833 = vmatpush1.msra.mxu0 0.0
        %1834 = vmatprep.subr.mxu0 0.0
        %1835 = vmatpush1.msra.mxu0 0.0
        %1836 = vmatprep.subr.mxu0 0.0
        %1837 = vmatpush1.msra.mxu0 0.0
        %1838 = vmatprep.subr.mxu0 0.0
        %1839 = vmatpush1.msra.mxu0 0.0
        %1840 = vmatprep.subr.mxu0 0.0
        %1841 = vmatpush1.msra.mxu0 0.0
        %1842 = vmatprep.subr.mxu0 0.0
        %1843 = vmatpush1.msra.mxu0 0.0
        %1844 = vmatprep.subr.mxu0 0.0
        %1845 = vmatpush1.msra.mxu0 0.0
        %1846 = vmatprep.subr.mxu0 0.0
        %1847 = vmatpush1.msra.mxu0 0.0
        %1848 = vmatprep.subr.mxu0 0.0
        %1849 = vmatpush1.msra.mxu0 0.0
        %1850 = vmatprep.subr.mxu0 0.0
        %1851 = vmatpush1.msra.mxu0 0.0
        %1852 = vmatprep.subr.mxu0 0.0
        %1853 = vmatpush1.msra.mxu0 0.0
        %1854 = vmatprep.subr.mxu0 0.0
        %1855 = vmatpush1.msra.mxu0 0.0
        %1856 = vmatprep.subr.mxu0 0.0
        %1857 = vmatpush1.msra.mxu0 0.0
        %1858 = vmatprep.subr.mxu0 0.0
        %1859 = vmatpush1.msra.mxu0 0.0
        %1860 = vmatprep.subr.mxu0 0.0
        %1861 = vmatpush1.msra.mxu0 0.0
        %1862 = vmatprep.subr.mxu0 0.0
        %1863 = vmatpush1.msra.mxu0 0.0
        %1864 = vmatprep.subr.mxu0 0.0
        %1865 = vmatpush1.msra.mxu0 0.0
        %1866 = vmatprep.subr.mxu0 0.0
        %1867 = vmatpush1.msra.mxu0 0.0
        %1868 = vmatprep.subr.mxu0 0.0
        %1869 = vmatpush1.msra.mxu0 0.0
        %1870 = vmatprep.subr.mxu0 0.0
        %1871 = vmatpush1.msra.mxu0 0.0
        %1872 = vmatprep.subr.mxu0 0.0
        %1873 = vmatpush1.msra.mxu0 0.0
        %1874 = vmatprep.subr.mxu0 0.0
        %1875 = vmatpush1.msra.mxu0 0.0
        %1876 = vmatprep.subr.mxu0 0.0
        %1877 = vmatpush1.msra.mxu0 0.0
        %1878 = vmatprep.subr.mxu0 0.0
        %1879 = vmatpush1.msra.mxu0 0.0
        %1880 = vmatprep.subr.mxu0 0.0
        %1881 = vmatpush1.msra.mxu0 0.0
        %1882 = vmatprep.subr.mxu0 0.0
        %1883 = vmatpush1.msra.mxu0 0.0
        %1884 = vmatprep.subr.mxu0 0.0
        %1885 = vmatpush1.msra.mxu0 0.0
        %1886 = vmatprep.subr.mxu0 0.0
        %1887 = vmatpush1.msra.mxu0 0.0
        %1888 = vmatprep.mubr.f32.mxu0 0.0
        %1889 = vmatmul.mubr.f32.gmra.mrb[0].mxu0 %v1822
        %v1890 = vpop.f32.mrb[0].mxu0
        %v1891 = vadd.f32 %v1819, %v1890
        %v1892 = vpop.f32.mrb[0].mxu0
        %v1893 = vadd.f32 %v1819, %v1892
        %1894 = vdwg.mxu0
        %v1895 = vadd.f32 %v1891, 2.0
        %v1896 = vadd.f32 %v1893, 2.0
        %v1897 = vmin.f32 %v1895, 0.0
        %v1898 = vmin.f32 %v1896, 0.0
        %v1899 = vand.u32 2147483647, %v1895
        %v1900 = vand.u32 2147483647, %v1896
        %v1901 = vsub.f32 0.0, %v1899
        %v1902 = vsub.f32 0.0, %v1900
        %v1903 = vmul.f32 %v1901, 1.442695
        %v1904 = vpow.pop %v1903
        %v1905 = vmul.f32 %v1902, 1.442695
        %v1906 = vpow.pop %v1905
        %v1907 = vadd.f32 %v1904, 1.0
        %v1908 = vlog2.pop %v1907
        %v1909 = vmul.f32 %v1908, 0.6931472
        %v1910 = vmul.f32 -0.5, %v1904
        %v1911 = vadd.f32 %v1910, 1.0
        %v1912 = vmul.f32 %v1911, %v1904
        %v1913 = vand.u32 2147483647, %v1904
        %vm1914 = vcmp.lt.f32.partialorder %v1913, 0.0004427343
        %v1915 = vsel %vm1914, %v1912, %v1909
        %v1916 = vadd.f32 %v1906, 1.0
        %v1917 = vlog2.pop %v1916
        %v1918 = vmul.f32 %v1917, 0.6931472
        %v1919 = vmul.f32 -0.5, %v1906
        %v1920 = vadd.f32 %v1919, 1.0
        %v1921 = vmul.f32 %v1920, %v1906
        %v1922 = vand.u32 2147483647, %v1906
        %vm1923 = vcmp.lt.f32.partialorder %v1922, 0.0004427343
        %v1924 = vsel %vm1923, %v1921, %v1918
        %v1925 = vsub.f32 %v1897, %v1915
        %v1926 = vsub.f32 %v1898, %v1924
        %v1927 = vmul.f32 %v1925, 1.442695
        %v1928 = vpow.pop %v1927
        %v1929 = vmul.f32 %v1926, 1.442695
        %v1930 = vpow.pop %v1929
        %v1931 = vmul.f32 %v1435, %v1928
        %v1932 = vmul.f32 %v1436, %v1930
        %v1933 = vadd.f32 %v1931, %v1808
        %v1934 = vadd.f32 %v1932, %v1810
        %v1935 = vrot.slane %v1925, 4
        %v1936 = vadd.f32 %v1925, %v1935
        %v1937 = vrot.slane %v1936, 2
        %v1938 = vadd.f32 %v1936, %v1937
        %v1939 = vrot.slane %v1938, 1
        %v1940 = vadd.f32 %v1938, %v1939
        %v1941 = vrot.slane %v1926, 4
        %v1942 = vadd.f32 %v1926, %v1941
        %v1943 = vrot.slane %v1942, 2
        %v1944 = vadd.f32 %v1942, %v1943
        %v1945 = vrot.slane %v1944, 1
        %v1946 = vadd.f32 %v1944, %v1945
        %v1947 = vadd.f32 %v1449, %v1940
        %v1948 = vadd.f32 %v1450, %v1946
        %1949 = vst [vmem:[%s427] sm:$0xff] %v457
        %1950 = vst [vmem:[%s427 + $0x8] sm:$0xff] %v458
        %1951 = vst [vmem:[%s434] sm:$0xff] %v1933
        %1952 = vst [vmem:[%s434 + $0x8] sm:$0xff] %v1934
        %v1955 = vcombine.low %v1947, %v1948
        %v1957 = vunpack.c.l.s4 1966171168
        %v1958 = vunpack.c.0.s8 %v1957
        %v1959 = vlaneseq
        %v1960 = vshrl.u32 %v1959, 7
        %v1961 = vsub.s32 %v1958, %v1960
        %v1962 = vrot.slane %v1955, %v1961
        %v1964 = vunpack.c.l.s4 1966171168
        %v1965 = vunpack.c.0.s8 %v1964
        %v1966 = vlaneseq
        %v1967 = vshrl.u32 %v1966, 7
        %v1968 = vsub.s32 %v1965, %v1967
        %v1969 = vrot.slane %v1962, %v1968
        %v1971 = vlaneseq
        %vm1972 = vcmp.ge.s32.totalorder %v1971, 0
        %vm1973 = vcmp.lt.s32.totalorder %v1971, 256
        %vm1974 = vmand %vm1972, %vm1973
        %1975 = vst.msk [vmem:[%s441] sm:$0x3] %vm1974, %v1969
        %s1976 = sand.u32 %s258, 1
        %s1977 = scalar_lea.sflag [#allocation3], %s1976
        %s1978 = sand.u32 %s258, 1
        %s1979 = smul.addr %s1978, 16
        %s1980 = scalar_lea.vmem [#allocation2], %s1979
        %s1981 = sand.u32 %s30, 1
        %s1982 = scalar_lea.sflag [#allocation5], %s1981
        %s1983 = sand.u32 %s284, 1
        %s1984 = smul.addr %s1983, 16
        %s1985 = scalar_lea.vmem [#allocation4], %s1984
        %s1986 = sand.u32 %s30, 1
        %s1987 = scalar_lea.sflag [#allocation5], %s1986
        %s1988 = sand.u32 %s310, 1
        %s1989 = smul.addr %s1988, 2
        %s1990 = scalar_lea.vmem [#allocation6], %s1989
        // Predicated region
        $region61: #{tpu_custom_call.1} parent=59 // pred_check
          %p1991 = pneg %p268
        $region62: #{tpu_custom_call.1} parent=59 // pred_check_branch
          %1993 = sbr.rel (%p1991) target = $region64
        $region63: #{tpu_custom_call.1} parent=59 // pred_region
          %s1994 = smul.u32 2, %s30
          %s1996 = ssub.s32 256, 256
          %1997 = vsyncadd %s1977, %s1996
          %s1998 = smul.addr %s1994, 128
          %s1999 = scalar_lea.hbm %s10, %s1998
          %s2001 = sshll.u32 %s1980, 4
          %s2002 = int_to_ptr.vmem [resolvable:$true] %s2001
          %2004 = dma.vmem_to_hbm [thread:$0]  %s2002, 256, %s1999, %s1977
        $region64: #{tpu_custom_call.1} parent=59 // pred_fallthru
          _
        // Predicated region
        $region65: #{tpu_custom_call.1} parent=59 // pred_check
          %p2005 = pneg %p294
        $region66: #{tpu_custom_call.1} parent=59 // pred_check_branch
          %2007 = sbr.rel (%p2005) target = $region68
        $region67: #{tpu_custom_call.1} parent=59 // pred_region
          %s2008 = smul.u32 2, %s30
          %s2010 = ssub.s32 256, 256
          %2011 = vsyncadd %s1982, %s2010
          %s2012 = smul.addr %s2008, 128
          %s2013 = scalar_lea.hbm %s11, %s2012
          %s2015 = sshll.u32 %s1985, 4
          %s2016 = int_to_ptr.vmem [resolvable:$true] %s2015
          %2018 = dma.vmem_to_hbm [thread:$0]  %s2016, 256, %s2013, %s1982
        $region68: #{tpu_custom_call.1} parent=59 // pred_fallthru
          _
        // Predicated region
        $region69: #{tpu_custom_call.1} parent=59 // pred_check
          %p2019 = pneg %p320
        $region70: #{tpu_custom_call.1} parent=59 // pred_check_branch
          %2021 = sbr.rel (%p2019) target = $region72
        $region71: #{tpu_custom_call.1} parent=59 // pred_region
          %s2022 = smul.u32 2, %s30
          %s2024 = ssub.s32 32, 32
          %2025 = vsyncadd %s1987, %s2024
          %s2026 = smul.addr %s2022, 16
          %s2027 = scalar_lea.hbm %s12, %s2026
          %s2029 = sshll.u32 %s1990, 4
          %s2030 = int_to_ptr.vmem [resolvable:$true] %s2029
          %2032 = dma.vmem_to_hbm [thread:$0]  %s2030, 32, %s2027, %s1987
        $region72: #{tpu_custom_call.1} parent=59 // pred_fallthru
          _
      $region60: #{tpu_custom_call.1} parent=5 // pred_fallthru
        _
      %p2033 = scmp.le.s32.totalorder 2, %s25
      // Predicated region
      $region73: #{tpu_custom_call.1} parent=5 // pred_check
        %p2034 = pneg %p2033
      $region74: #{tpu_custom_call.1} parent=5 // pred_check_branch
        %2036 = sbr.rel (%p2034) target = $region76
      $region75: #{tpu_custom_call.1} parent=5 // pred_region
        %s2037 = ssub.s32 %s25, 2
        // Predicated region
        $region77: #{tpu_custom_call.1} parent=75 // pred_check
          %p2038 = pneg %p274
        $region78: #{tpu_custom_call.1} parent=75 // pred_check_branch
          %2040 = sbr.rel (%p2038) target = $region80
        $region79: #{tpu_custom_call.1} parent=75 // pred_region
          %s2041 = sand.u32 %s259, 1
          %s2042 = scalar_lea.sflag [#allocation3], %s2041
          %s2043 = sand.u32 %s259, 1
          %s2044 = smul.addr %s2043, 16
          %s2045 = scalar_lea.vmem [#allocation2], %s2044
          %2046 = dma.done %s2042, 256
        $region80: #{tpu_custom_call.1} parent=75 // pred_fallthru
          _
        // Predicated region
        $region81: #{tpu_custom_call.1} parent=75 // pred_check
          %p2047 = pneg %p300
        $region82: #{tpu_custom_call.1} parent=75 // pred_check_branch
          %2049 = sbr.rel (%p2047) target = $region84
        $region83: #{tpu_custom_call.1} parent=75 // pred_region
          %s2050 = sand.u32 %s31, 1
          %s2051 = scalar_lea.sflag [#allocation5], %s2050
          %s2052 = sand.u32 %s285, 1
          %s2053 = smul.addr %s2052, 16
          %s2054 = scalar_lea.vmem [#allocation4], %s2053
          %2055 = dma.done %s2051, 256
        $region84: #{tpu_custom_call.1} parent=75 // pred_fallthru
          _
        // Predicated region
        $region85: #{tpu_custom_call.1} parent=75 // pred_check
          %p2056 = pneg %p326
        $region86: #{tpu_custom_call.1} parent=75 // pred_check_branch
          %2058 = sbr.rel (%p2056) target = $region88
        $region87: #{tpu_custom_call.1} parent=75 // pred_region
          %s2059 = sand.u32 %s31, 1
          %s2060 = scalar_lea.sflag [#allocation5], %s2059
          %s2061 = sand.u32 %s311, 1
          %s2062 = smul.addr %s2061, 2
          %s2063 = scalar_lea.vmem [#allocation6], %s2062
          %2064 = dma.done %s2060, 32
        $region88: #{tpu_custom_call.1} parent=75 // pred_fallthru
          _
      $region76: #{tpu_custom_call.1} parent=5 // pred_fallthru
        _
    $region6: #{tpu_custom_call.1} parent=1 // loop_footer
      %s29 = sadd.s32 1, %s25
    $region7: #{tpu_custom_call.1} parent=1 // loop_footer_branch
      %24 = sbr.rel target = $region3
    $region8: #{tpu_custom_call.1} parent=1 // loop_exit
      _
    %2065 = vsyncpa [#allocation3], 1
    %s2066 = scalar_lea.sflag [#allocation3], 1
    %2067 = vsyncpa %s2066, 1
    %2068 = vsyncpa [#allocation5], 1
    %s2069 = scalar_lea.sflag [#allocation5], 1
    %2070 = vsyncpa %s2069, 1

</llo_original>
